<compile_context>
chip_gen: v6e
topology: v6e:2x2x1
jax: 0.10.0
libtpu: 0.0.40
codegen_flags: <defaults>
</compile_context>

<pallas_src>
import jax
import jax.numpy as jnp
from jax import lax
from jax.experimental import pallas as pl
from jax.experimental.pallas import tpu as pltpu

VOCAB = 64        # input_size
EMB = 32          # embedding_size
HIDDEN = 32       # hidden_size  (4*HIDDEN = 128 -> one full lane tile of gates)
NUM_LAYERS = 2
SEQ = 8
BATCH = 2
BATCH_PAD = 8     # pad batch to a full sublane group -> all-tile-aligned ops
P_DROPOUT = 0.5   # identity in eval mode (deterministic forward)


def _vmem_spec():
    # Whole (small) array resident in VMEM, no blocking / no grid.
    return pl.BlockSpec(memory_space=pltpu.MemorySpace.VMEM)


# --------------------------- fused encoder kernel ---------------------------
def encoder_kernel(tok_ref, fused0_ref, whh0_ref, b0_ref,
                   wih1_ref, whh1_ref, b1_ref,
                   hid_ref, cell_ref):
    BP = BATCH_PAD
    G = 4 * HIDDEN

    # ---- embedding + layer-0 input projection, hoisted for all timesteps ----
    # one-hot(token) @ (table @ W_ih0): a single (SEQ*BP, VOCAB)@(VOCAB, 4H)
    # MXU matmul.  Padded batch rows carry token -1 -> all-zero one-hot row.
    tok = tok_ref[...]                                            # (SEQ*BP, 1)
    vocab_iota = lax.broadcasted_iota(jnp.int32, (SEQ * BP, VOCAB), 1)
    onehot = (vocab_iota == tok).astype(jnp.float32)              # (SEQ*BP, V)
    gx0 = (jnp.dot(onehot, fused0_ref[...],
                   preferred_element_type=jnp.float32)
           + b0_ref[...])                                         # (SEQ*BP, 4H)
    # TODO(synk): nn.Dropout(p=0.5) after the embedding and between the LSTM
    # layers is identity in eval mode; training-mode stochastic dropout (which
    # would also invalidate the table@W_ih0 fold) is not reproduced here.

    # ---- hoisted per-lane activation constants: sigmoid via one tanh pass ---
    # lanes [0,2H) and [3H,4H) are i/f/o gates: sigmoid(x) = 0.5*tanh(x/2)+0.5
    # lanes [2H,3H)             are the g gate:  tanh(x)
    lane = lax.broadcasted_iota(jnp.int32, (BP, G), 1)
    is_g = (lane >= 2 * HIDDEN) & (lane < 3 * HIDDEN)
    pre = jnp.where(is_g, 1.0, 0.5).astype(jnp.float32)    # scale before tanh
    post_a = pre                                            # same values (FMA a)
    post_b = jnp.where(is_g, 0.0, 0.5).astype(jnp.float32)  # FMA b

    # Loop-invariant weight / bias loads (hoisted; b1 sublane-broadcast once).
    whh0 = whh0_ref[...]
    wih1 = wih1_ref[...]
    whh1 = whh1_ref[...]
    b1 = jnp.broadcast_to(b1_ref[...], (BP, G))

    def lstm_cell(gates, c):
        # One 128-lane EUP tanh pass activates all four gates at once.
        act = post_a * jnp.tanh(gates * pre) + post_b
        i = act[:, 0 * HIDDEN:1 * HIDDEN]
        f = act[:, 1 * HIDDEN:2 * HIDDEN]
        g = act[:, 2 * HIDDEN:3 * HIDDEN]
        o = act[:, 3 * HIDDEN:4 * HIDDEN]
        c_new = f * c + i * g
        h_new = o * jnp.tanh(c_new)
        return h_new, c_new

    zeros = jnp.zeros((BP, HIDDEN), jnp.float32)
    h0, c0, h1, c1 = zeros, zeros, zeros, zeros

    # ---- wavefront recurrence: step s = layer-0 @ time s, layer-1 @ s-1 -----
    # Fully static unroll (SEQ+1 = 9 steps); within a step the two layer
    # bodies are data-independent, so the LLO scheduler can interleave their
    # MXU / EUP / VPU work inside the same bundles.
    for s in range(SEQ + 1):
        nh0, nc0 = h0, c0
        if s < SEQ:                                   # layer 0, time step s
            gates0 = gx0[s * BP:(s + 1) * BP, :] + jnp.dot(
                h0, whh0, preferred_element_type=jnp.float32)
            nh0, nc0 = lstm_cell(gates0, c0)
        if s >= 1:                                    # layer 1, time step s-1
            # `h0` here is still layer-0's output from the previous wavefront
            # step; the h0 @ W_ih1 term has no dependence on h1, so it can be
            # scheduled ahead of h1's critical chain.
            gates1 = (jnp.dot(h0, wih1, preferred_element_type=jnp.float32)
                      + jnp.dot(h1, whh1, preferred_element_type=jnp.float32)
                      + b1)
            h1, c1 = lstm_cell(gates1, c1)
        h0, c0 = nh0, nc0

    # ---- final (num_layers, batch, hidden) states; drop the batch padding ---
    hid_ref[0] = h0[:BATCH]
    hid_ref[1] = h1[:BATCH]
    cell_ref[0] = c0[:BATCH]
    cell_ref[1] = c1[:BATCH]


# ---------------------------- host-side wrapper ------------------------------
def encoder_forward(token_ids, table, lstm_params):
    T, B = token_ids.shape
    assert T == SEQ and B == BATCH
    (w_ih0, w_hh0, b0), (w_ih1, w_hh1, b1) = lstm_params

    # Pad batch to a full 8-sublane group; sentinel -1 yields an all-zero
    # one-hot (zero embedding) for padded rows, which the kernel drops again
    # when writing the outputs.
    tok = jnp.full((T, BATCH_PAD), -1, dtype=jnp.int32)
    tok = tok.at[:, :B].set(token_ids.astype(jnp.int32))
    tok = tok.reshape(T * BATCH_PAD, 1)

    # Fold the embedding table into layer-0's input projection (eval-mode
    # dropout is identity, so Embedding -> Linear collapses to one matmul).
    fused0 = jnp.dot(table, w_ih0, precision=jax.lax.Precision.HIGHEST)

    hidden, cell = pl.pallas_call(
        encoder_kernel,
        out_shape=(
            jax.ShapeDtypeStruct((NUM_LAYERS, B, HIDDEN), jnp.float32),
            jax.ShapeDtypeStruct((NUM_LAYERS, B, HIDDEN), jnp.float32),
        ),
        in_specs=[_vmem_spec()] * 7,
        out_specs=(_vmem_spec(), _vmem_spec()),
    )(tok, fused0, w_hh0, b0, w_ih1, w_hh1, b1)
    return hidden, cell


# ---------------- deterministic parameter initialization --------------------
def init_params(key):
    keys = jax.random.split(key, 1 + 4 * NUM_LAYERS)
    table = jax.random.normal(keys[0], (VOCAB, EMB), jnp.float32)
    bound = 1.0 / jnp.sqrt(jnp.float32(HIDDEN))
    in_dims = [EMB] + [HIDDEN] * (NUM_LAYERS - 1)
    params = []
    for l in range(NUM_LAYERS):
        k_wih, k_whh, k_bih, k_bhh = keys[1 + 4 * l:1 + 4 * (l + 1)]
        w_ih = jax.random.uniform(k_wih, (in_dims[l], 4 * HIDDEN), jnp.float32,
                                  -bound, bound)
        w_hh = jax.random.uniform(k_whh, (HIDDEN, 4 * HIDDEN), jnp.float32,
                                  -bound, bound)
        b_ih = jax.random.uniform(k_bih, (1, 4 * HIDDEN), jnp.float32, -bound, bound)
        b_hh = jax.random.uniform(k_bhh, (1, 4 * HIDDEN), jnp.float32, -bound, bound)
        params.append((w_ih, w_hh, b_ih + b_hh))   # combined bias, like PyTorch
    return table, params


# ---------------- pure-JAX reference (eval-mode forward) --------------------
def encoder_reference(token_ids, table, lstm_params):
    x = table[token_ids]                        # (T, B, EMB)
    hs, cs = [], []
    for (w_ih, w_hh, b) in lstm_params:
        T, B, _ = x.shape
        H = w_hh.shape[0]
        h = jnp.zeros((B, H), jnp.float32)
        c = jnp.zeros((B, H), jnp.float32)
        outs = []
        for t in range(T):
            gates = x[t] @ w_ih + h @ w_hh + b
            i = jax.nn.sigmoid(gates[:, 0 * H:1 * H])
            f = jax.nn.sigmoid(gates[:, 1 * H:2 * H])
            g = jnp.tanh(gates[:, 2 * H:3 * H])
            o = jax.nn.sigmoid(gates[:, 3 * H:4 * H])
            c = f * c + i * g
            h = o * jnp.tanh(c)
            outs.append(h)
        x = jnp.stack(outs, 0)
        hs.append(h)
        cs.append(c)
    return jnp.stack(hs, 0), jnp.stack(cs, 0)


if __name__ == "__main__":
    key = jax.random.PRNGKey(0)
    k_tok, k_par = jax.random.split(key)
    token_ids = jax.random.randint(k_tok, (SEQ, BATCH), 0, VOCAB, dtype=jnp.int32)
    table, lstm_params = init_params(k_par)

    hidden, cell = encoder_forward(token_ids, table, lstm_params)
    jax.block_until_ready((hidden, cell))

    assert hidden.shape == (NUM_LAYERS, BATCH, HIDDEN), hidden.shape
    assert cell.shape == (NUM_LAYERS, BATCH, HIDDEN), cell.shape
    assert hidden.dtype == jnp.float32 and cell.dtype == jnp.float32
    assert bool(jnp.all(jnp.isfinite(hidden))) and bool(jnp.all(jnp.isfinite(cell)))

    ref_h, ref_c = encoder_reference(token_ids, table, lstm_params)
    assert bool(jnp.allclose(hidden, ref_h, atol=3e-2, rtol=3e-2))
    assert bool(jnp.allclose(cell, ref_c, atol=3e-2, rtol=3e-2))

    print("KERNEL_OK")
</pallas_src>

<mosaic_0001>
module attributes {stable_mosaic.version = 11 : i64} {
  func.func @encoder_kernel(%arg0: memref<64x1xi32, #tpu.memory_space<vmem>>, %arg1: memref<64x128xf32, #tpu.memory_space<vmem>>, %arg2: memref<32x128xf32, #tpu.memory_space<vmem>>, %arg3: memref<1x128xf32, #tpu.memory_space<vmem>>, %arg4: memref<32x128xf32, #tpu.memory_space<vmem>>, %arg5: memref<32x128xf32, #tpu.memory_space<vmem>>, %arg6: memref<1x128xf32, #tpu.memory_space<vmem>>, %arg7: memref<2x2x32xf32, #tpu.memory_space<vmem>>, %arg8: memref<2x2x32xf32, #tpu.memory_space<vmem>>) attributes {dimension_semantics = [], scalar_prefetch = 0 : i64, scratch_operands = 0 : i64, tpu.core_type = #tpu.core_type<tc>} {
    %c0 = arith.constant 0 : index
    %c0_0 = arith.constant 0 : index
    %0 = vector.load %arg0[%c0, %c0_0] : memref<64x1xi32, #tpu.memory_space<vmem>>, vector<64x1xi32>
    %1 = tpu.iota {dimensions = array<i32: 1>} : vector<64x64xi32>
    %2 = vector.broadcast %0 : vector<64x1xi32> to vector<64x64xi32>
    %3 = arith.cmpi eq, %1, %2 : vector<64x64xi32>
    %4 = arith.extui %3 : vector<64x64xi1> to vector<64x64xi32>
    %5 = arith.sitofp %4 : vector<64x64xi32> to vector<64x64xf32>
    %c0_1 = arith.constant 0 : index
    %c0_2 = arith.constant 0 : index
    %6 = vector.load %arg1[%c0_1, %c0_2] : memref<64x128xf32, #tpu.memory_space<vmem>>, vector<64x128xf32>
    %cst = arith.constant dense<0.000000e+00> : vector<64x128xf32>
    %7 = tpu.matmul %5, %6, %cst {dimension_numbers = #tpu.dot_dimension_numbers<[1], [0], [0], [1], [0, 0, 1, 1], [], []>} : vector<64x64xf32>, vector<64x128xf32>, vector<64x128xf32> -> vector<64x128xf32>
    %c0_3 = arith.constant 0 : index
    %c0_4 = arith.constant 0 : index
    %8 = vector.load %arg3[%c0_3, %c0_4] : memref<1x128xf32, #tpu.memory_space<vmem>>, vector<1x128xf32>
    %9 = vector.broadcast %8 : vector<1x128xf32> to vector<64x128xf32>
    %10 = arith.addf %7, %9 : vector<64x128xf32>
    %11 = tpu.iota {dimensions = array<i32: 1>} : vector<8x128xi32>
    %c64_i32 = arith.constant 64 : i32
    %12 = vector.broadcast %c64_i32 : i32 to vector<8x128xi32>
    %13 = arith.cmpi sge, %11, %12 : vector<8x128xi32>
    %c96_i32 = arith.constant 96 : i32
    %14 = vector.broadcast %c96_i32 : i32 to vector<8x128xi32>
    %15 = arith.cmpi slt, %11, %14 : vector<8x128xi32>
    %16 = arith.andi %13, %15 : vector<8x128xi1>
    %cst_5 = arith.constant 1.000000e+00 : f32
    %cst_6 = arith.constant 5.000000e-01 : f32
    %17 = vector.broadcast %cst_5 : f32 to vector<8x128xf32>
    %18 = vector.broadcast %cst_6 : f32 to vector<8x128xf32>
    %19 = arith.select %16, %17, %18 : vector<8x128xi1>, vector<8x128xf32>
    %cst_7 = arith.constant 0.000000e+00 : f32
    %cst_8 = arith.constant 5.000000e-01 : f32
    %20 = vector.broadcast %cst_7 : f32 to vector<8x128xf32>
    %21 = vector.broadcast %cst_8 : f32 to vector<8x128xf32>
    %22 = arith.select %16, %20, %21 : vector<8x128xi1>, vector<8x128xf32>
    %c0_9 = arith.constant 0 : index
    %c0_10 = arith.constant 0 : index
    %23 = vector.load %arg2[%c0_9, %c0_10] : memref<32x128xf32, #tpu.memory_space<vmem>>, vector<32x128xf32>
    %c0_11 = arith.constant 0 : index
    %c0_12 = arith.constant 0 : index
    %24 = vector.load %arg4[%c0_11, %c0_12] : memref<32x128xf32, #tpu.memory_space<vmem>>, vector<32x128xf32>
    %c0_13 = arith.constant 0 : index
    %c0_14 = arith.constant 0 : index
    %25 = vector.load %arg5[%c0_13, %c0_14] : memref<32x128xf32, #tpu.memory_space<vmem>>, vector<32x128xf32>
    %c0_15 = arith.constant 0 : index
    %c0_16 = arith.constant 0 : index
    %26 = vector.load %arg6[%c0_15, %c0_16] : memref<1x128xf32, #tpu.memory_space<vmem>>, vector<1x128xf32>
    %27 = vector.shape_cast %26 : vector<1x128xf32> to vector<1x128xf32>
    %28 = vector.broadcast %27 : vector<1x128xf32> to vector<8x128xf32>
    %cst_17 = arith.constant 0.000000e+00 : f32
    %29 = vector.broadcast %cst_17 : f32 to vector<8x32xf32>
    %30 = vector.extract_strided_slice %10 {offsets = [0, 0], sizes = [8, 128], strides = [1, 1]} : vector<64x128xf32> to vector<8x128xf32>
    %cst_18 = arith.constant dense<0.000000e+00> : vector<8x128xf32>
    %31 = tpu.matmul %29, %23, %cst_18 {dimension_numbers = #tpu.dot_dimension_numbers<[1], [0], [0], [1], [0, 0, 1, 1], [], []>} : vector<8x32xf32>, vector<32x128xf32>, vector<8x128xf32> -> vector<8x128xf32>
    %32 = arith.addf %30, %31 : vector<8x128xf32>
    %33 = arith.mulf %32, %19 : vector<8x128xf32>
    %34 = math.tanh %33 : vector<8x128xf32>
    %35 = arith.mulf %19, %34 : vector<8x128xf32>
    %36 = arith.addf %35, %22 : vector<8x128xf32>
    %37 = vector.extract_strided_slice %36 {offsets = [0, 0], sizes = [8, 32], strides = [1, 1]} : vector<8x128xf32> to vector<8x32xf32>
    %38 = vector.extract_strided_slice %36 {offsets = [0, 32], sizes = [8, 32], strides = [1, 1]} : vector<8x128xf32> to vector<8x32xf32>
    %39 = vector.extract_strided_slice %36 {offsets = [0, 64], sizes = [8, 32], strides = [1, 1]} : vector<8x128xf32> to vector<8x32xf32>
    %40 = vector.extract_strided_slice %36 {offsets = [0, 96], sizes = [8, 32], strides = [1, 1]} : vector<8x128xf32> to vector<8x32xf32>
    %41 = arith.mulf %38, %29 : vector<8x32xf32>
    %42 = arith.mulf %37, %39 : vector<8x32xf32>
    %43 = arith.addf %41, %42 : vector<8x32xf32>
    %44 = math.tanh %43 : vector<8x32xf32>
    %45 = arith.mulf %40, %44 : vector<8x32xf32>
    %46 = vector.extract_strided_slice %10 {offsets = [8, 0], sizes = [8, 128], strides = [1, 1]} : vector<64x128xf32> to vector<8x128xf32>
    %cst_19 = arith.constant dense<0.000000e+00> : vector<8x128xf32>
    %47 = tpu.matmul %45, %23, %cst_19 {dimension_numbers = #tpu.dot_dimension_numbers<[1], [0], [0], [1], [0, 0, 1, 1], [], []>} : vector<8x32xf32>, vector<32x128xf32>, vector<8x128xf32> -> vector<8x128xf32>
    %48 = arith.addf %46, %47 : vector<8x128xf32>
    %49 = arith.mulf %48, %19 : vector<8x128xf32>
    %50 = math.tanh %49 : vector<8x128xf32>
    %51 = arith.mulf %19, %50 : vector<8x128xf32>
    %52 = arith.addf %51, %22 : vector<8x128xf32>
    %53 = vector.extract_strided_slice %52 {offsets = [0, 0], sizes = [8, 32], strides = [1, 1]} : vector<8x128xf32> to vector<8x32xf32>
    %54 = vector.extract_strided_slice %52 {offsets = [0, 32], sizes = [8, 32], strides = [1, 1]} : vector<8x128xf32> to vector<8x32xf32>
    %55 = vector.extract_strided_slice %52 {offsets = [0, 64], sizes = [8, 32], strides = [1, 1]} : vector<8x128xf32> to vector<8x32xf32>
    %56 = vector.extract_strided_slice %52 {offsets = [0, 96], sizes = [8, 32], strides = [1, 1]} : vector<8x128xf32> to vector<8x32xf32>
    %57 = arith.mulf %54, %43 : vector<8x32xf32>
    %58 = arith.mulf %53, %55 : vector<8x32xf32>
    %59 = arith.addf %57, %58 : vector<8x32xf32>
    %60 = math.tanh %59 : vector<8x32xf32>
    %61 = arith.mulf %56, %60 : vector<8x32xf32>
    %cst_20 = arith.constant dense<0.000000e+00> : vector<8x128xf32>
    %62 = tpu.matmul %45, %24, %cst_20 {dimension_numbers = #tpu.dot_dimension_numbers<[1], [0], [0], [1], [0, 0, 1, 1], [], []>} : vector<8x32xf32>, vector<32x128xf32>, vector<8x128xf32> -> vector<8x128xf32>
    %cst_21 = arith.constant dense<0.000000e+00> : vector<8x128xf32>
    %63 = tpu.matmul %29, %25, %cst_21 {dimension_numbers = #tpu.dot_dimension_numbers<[1], [0], [0], [1], [0, 0, 1, 1], [], []>} : vector<8x32xf32>, vector<32x128xf32>, vector<8x128xf32> -> vector<8x128xf32>
    %64 = arith.addf %62, %63 : vector<8x128xf32>
    %65 = arith.addf %64, %28 : vector<8x128xf32>
    %66 = arith.mulf %65, %19 : vector<8x128xf32>
    %67 = math.tanh %66 : vector<8x128xf32>
    %68 = arith.mulf %19, %67 : vector<8x128xf32>
    %69 = arith.addf %68, %22 : vector<8x128xf32>
    %70 = vector.extract_strided_slice %69 {offsets = [0, 0], sizes = [8, 32], strides = [1, 1]} : vector<8x128xf32> to vector<8x32xf32>
    %71 = vector.extract_strided_slice %69 {offsets = [0, 32], sizes = [8, 32], strides = [1, 1]} : vector<8x128xf32> to vector<8x32xf32>
    %72 = vector.extract_strided_slice %69 {offsets = [0, 64], sizes = [8, 32], strides = [1, 1]} : vector<8x128xf32> to vector<8x32xf32>
    %73 = vector.extract_strided_slice %69 {offsets = [0, 96], sizes = [8, 32], strides = [1, 1]} : vector<8x128xf32> to vector<8x32xf32>
    %74 = arith.mulf %71, %29 : vector<8x32xf32>
    %75 = arith.mulf %70, %72 : vector<8x32xf32>
    %76 = arith.addf %74, %75 : vector<8x32xf32>
    %77 = math.tanh %76 : vector<8x32xf32>
    %78 = arith.mulf %73, %77 : vector<8x32xf32>
    %79 = vector.extract_strided_slice %10 {offsets = [16, 0], sizes = [8, 128], strides = [1, 1]} : vector<64x128xf32> to vector<8x128xf32>
    %cst_22 = arith.constant dense<0.000000e+00> : vector<8x128xf32>
    %80 = tpu.matmul %61, %23, %cst_22 {dimension_numbers = #tpu.dot_dimension_numbers<[1], [0], [0], [1], [0, 0, 1, 1], [], []>} : vector<8x32xf32>, vector<32x128xf32>, vector<8x128xf32> -> vector<8x128xf32>
    %81 = arith.addf %79, %80 : vector<8x128xf32>
    %82 = arith.mulf %81, %19 : vector<8x128xf32>
    %83 = math.tanh %82 : vector<8x128xf32>
    %84 = arith.mulf %19, %83 : vector<8x128xf32>
    %85 = arith.addf %84, %22 : vector<8x128xf32>
    %86 = vector.extract_strided_slice %85 {offsets = [0, 0], sizes = [8, 32], strides = [1, 1]} : vector<8x128xf32> to vector<8x32xf32>
    %87 = vector.extract_strided_slice %85 {offsets = [0, 32], sizes = [8, 32], strides = [1, 1]} : vector<8x128xf32> to vector<8x32xf32>
    %88 = vector.extract_strided_slice %85 {offsets = [0, 64], sizes = [8, 32], strides = [1, 1]} : vector<8x128xf32> to vector<8x32xf32>
    %89 = vector.extract_strided_slice %85 {offsets = [0, 96], sizes = [8, 32], strides = [1, 1]} : vector<8x128xf32> to vector<8x32xf32>
    %90 = arith.mulf %87, %59 : vector<8x32xf32>
    %91 = arith.mulf %86, %88 : vector<8x32xf32>
    %92 = arith.addf %90, %91 : vector<8x32xf32>
    %93 = math.tanh %92 : vector<8x32xf32>
    %94 = arith.mulf %89, %93 : vector<8x32xf32>
    %cst_23 = arith.constant dense<0.000000e+00> : vector<8x128xf32>
    %95 = tpu.matmul %61, %24, %cst_23 {dimension_numbers = #tpu.dot_dimension_numbers<[1], [0], [0], [1], [0, 0, 1, 1], [], []>} : vector<8x32xf32>, vector<32x128xf32>, vector<8x128xf32> -> vector<8x128xf32>
    %cst_24 = arith.constant dense<0.000000e+00> : vector<8x128xf32>
    %96 = tpu.matmul %78, %25, %cst_24 {dimension_numbers = #tpu.dot_dimension_numbers<[1], [0], [0], [1], [0, 0, 1, 1], [], []>} : vector<8x32xf32>, vector<32x128xf32>, vector<8x128xf32> -> vector<8x128xf32>
    %97 = arith.addf %95, %96 : vector<8x128xf32>
    %98 = arith.addf %97, %28 : vector<8x128xf32>
    %99 = arith.mulf %98, %19 : vector<8x128xf32>
    %100 = math.tanh %99 : vector<8x128xf32>
    %101 = arith.mulf %19, %100 : vector<8x128xf32>
    %102 = arith.addf %101, %22 : vector<8x128xf32>
    %103 = vector.extract_strided_slice %102 {offsets = [0, 0], sizes = [8, 32], strides = [1, 1]} : vector<8x128xf32> to vector<8x32xf32>
    %104 = vector.extract_strided_slice %102 {offsets = [0, 32], sizes = [8, 32], strides = [1, 1]} : vector<8x128xf32> to vector<8x32xf32>
    %105 = vector.extract_strided_slice %102 {offsets = [0, 64], sizes = [8, 32], strides = [1, 1]} : vector<8x128xf32> to vector<8x32xf32>
    %106 = vector.extract_strided_slice %102 {offsets = [0, 96], sizes = [8, 32], strides = [1, 1]} : vector<8x128xf32> to vector<8x32xf32>
    %107 = arith.mulf %104, %76 : vector<8x32xf32>
    %108 = arith.mulf %103, %105 : vector<8x32xf32>
    %109 = arith.addf %107, %108 : vector<8x32xf32>
    %110 = math.tanh %109 : vector<8x32xf32>
    %111 = arith.mulf %106, %110 : vector<8x32xf32>
    %112 = vector.extract_strided_slice %10 {offsets = [24, 0], sizes = [8, 128], strides = [1, 1]} : vector<64x128xf32> to vector<8x128xf32>
    %cst_25 = arith.constant dense<0.000000e+00> : vector<8x128xf32>
    %113 = tpu.matmul %94, %23, %cst_25 {dimension_numbers = #tpu.dot_dimension_numbers<[1], [0], [0], [1], [0, 0, 1, 1], [], []>} : vector<8x32xf32>, vector<32x128xf32>, vector<8x128xf32> -> vector<8x128xf32>
    %114 = arith.addf %112, %113 : vector<8x128xf32>
    %115 = arith.mulf %114, %19 : vector<8x128xf32>
    %116 = math.tanh %115 : vector<8x128xf32>
    %117 = arith.mulf %19, %116 : vector<8x128xf32>
    %118 = arith.addf %117, %22 : vector<8x128xf32>
    %119 = vector.extract_strided_slice %118 {offsets = [0, 0], sizes = [8, 32], strides = [1, 1]} : vector<8x128xf32> to vector<8x32xf32>
    %120 = vector.extract_strided_slice %118 {offsets = [0, 32], sizes = [8, 32], strides = [1, 1]} : vector<8x128xf32> to vector<8x32xf32>
    %121 = vector.extract_strided_slice %118 {offsets = [0, 64], sizes = [8, 32], strides = [1, 1]} : vector<8x128xf32> to vector<8x32xf32>
    %122 = vector.extract_strided_slice %118 {offsets = [0, 96], sizes = [8, 32], strides = [1, 1]} : vector<8x128xf32> to vector<8x32xf32>
    %123 = arith.mulf %120, %92 : vector<8x32xf32>
    %124 = arith.mulf %119, %121 : vector<8x32xf32>
    %125 = arith.addf %123, %124 : vector<8x32xf32>
    %126 = math.tanh %125 : vector<8x32xf32>
    %127 = arith.mulf %122, %126 : vector<8x32xf32>
    %cst_26 = arith.constant dense<0.000000e+00> : vector<8x128xf32>
    %128 = tpu.matmul %94, %24, %cst_26 {dimension_numbers = #tpu.dot_dimension_numbers<[1], [0], [0], [1], [0, 0, 1, 1], [], []>} : vector<8x32xf32>, vector<32x128xf32>, vector<8x128xf32> -> vector<8x128xf32>
    %cst_27 = arith.constant dense<0.000000e+00> : vector<8x128xf32>
    %129 = tpu.matmul %111, %25, %cst_27 {dimension_numbers = #tpu.dot_dimension_numbers<[1], [0], [0], [1], [0, 0, 1, 1], [], []>} : vector<8x32xf32>, vector<32x128xf32>, vector<8x128xf32> -> vector<8x128xf32>
    %130 = arith.addf %128, %129 : vector<8x128xf32>
    %131 = arith.addf %130, %28 : vector<8x128xf32>
    %132 = arith.mulf %131, %19 : vector<8x128xf32>
    %133 = math.tanh %132 : vector<8x128xf32>
    %134 = arith.mulf %19, %133 : vector<8x128xf32>
    %135 = arith.addf %134, %22 : vector<8x128xf32>
    %136 = vector.extract_strided_slice %135 {offsets = [0, 0], sizes = [8, 32], strides = [1, 1]} : vector<8x128xf32> to vector<8x32xf32>
    %137 = vector.extract_strided_slice %135 {offsets = [0, 32], sizes = [8, 32], strides = [1, 1]} : vector<8x128xf32> to vector<8x32xf32>
    %138 = vector.extract_strided_slice %135 {offsets = [0, 64], sizes = [8, 32], strides = [1, 1]} : vector<8x128xf32> to vector<8x32xf32>
    %139 = vector.extract_strided_slice %135 {offsets = [0, 96], sizes = [8, 32], strides = [1, 1]} : vector<8x128xf32> to vector<8x32xf32>
    %140 = arith.mulf %137, %109 : vector<8x32xf32>
    %141 = arith.mulf %136, %138 : vector<8x32xf32>
    %142 = arith.addf %140, %141 : vector<8x32xf32>
    %143 = math.tanh %142 : vector<8x32xf32>
    %144 = arith.mulf %139, %143 : vector<8x32xf32>
    %145 = vector.extract_strided_slice %10 {offsets = [32, 0], sizes = [8, 128], strides = [1, 1]} : vector<64x128xf32> to vector<8x128xf32>
    %cst_28 = arith.constant dense<0.000000e+00> : vector<8x128xf32>
    %146 = tpu.matmul %127, %23, %cst_28 {dimension_numbers = #tpu.dot_dimension_numbers<[1], [0], [0], [1], [0, 0, 1, 1], [], []>} : vector<8x32xf32>, vector<32x128xf32>, vector<8x128xf32> -> vector<8x128xf32>
    %147 = arith.addf %145, %146 : vector<8x128xf32>
    %148 = arith.mulf %147, %19 : vector<8x128xf32>
    %149 = math.tanh %148 : vector<8x128xf32>
    %150 = arith.mulf %19, %149 : vector<8x128xf32>
    %151 = arith.addf %150, %22 : vector<8x128xf32>
    %152 = vector.extract_strided_slice %151 {offsets = [0, 0], sizes = [8, 32], strides = [1, 1]} : vector<8x128xf32> to vector<8x32xf32>
    %153 = vector.extract_strided_slice %151 {offsets = [0, 32], sizes = [8, 32], strides = [1, 1]} : vector<8x128xf32> to vector<8x32xf32>
    %154 = vector.extract_strided_slice %151 {offsets = [0, 64], sizes = [8, 32], strides = [1, 1]} : vector<8x128xf32> to vector<8x32xf32>
    %155 = vector.extract_strided_slice %151 {offsets = [0, 96], sizes = [8, 32], strides = [1, 1]} : vector<8x128xf32> to vector<8x32xf32>
    %156 = arith.mulf %153, %125 : vector<8x32xf32>
    %157 = arith.mulf %152, %154 : vector<8x32xf32>
    %158 = arith.addf %156, %157 : vector<8x32xf32>
    %159 = math.tanh %158 : vector<8x32xf32>
    %160 = arith.mulf %155, %159 : vector<8x32xf32>
    %cst_29 = arith.constant dense<0.000000e+00> : vector<8x128xf32>
    %161 = tpu.matmul %127, %24, %cst_29 {dimension_numbers = #tpu.dot_dimension_numbers<[1], [0], [0], [1], [0, 0, 1, 1], [], []>} : vector<8x32xf32>, vector<32x128xf32>, vector<8x128xf32> -> vector<8x128xf32>
    %cst_30 = arith.constant dense<0.000000e+00> : vector<8x128xf32>
    %162 = tpu.matmul %144, %25, %cst_30 {dimension_numbers = #tpu.dot_dimension_numbers<[1], [0], [0], [1], [0, 0, 1, 1], [], []>} : vector<8x32xf32>, vector<32x128xf32>, vector<8x128xf32> -> vector<8x128xf32>
    %163 = arith.addf %161, %162 : vector<8x128xf32>
    %164 = arith.addf %163, %28 : vector<8x128xf32>
    %165 = arith.mulf %164, %19 : vector<8x128xf32>
    %166 = math.tanh %165 : vector<8x128xf32>
    %167 = arith.mulf %19, %166 : vector<8x128xf32>
    %168 = arith.addf %167, %22 : vector<8x128xf32>
    %169 = vector.extract_strided_slice %168 {offsets = [0, 0], sizes = [8, 32], strides = [1, 1]} : vector<8x128xf32> to vector<8x32xf32>
    %170 = vector.extract_strided_slice %168 {offsets = [0, 32], sizes = [8, 32], strides = [1, 1]} : vector<8x128xf32> to vector<8x32xf32>
    %171 = vector.extract_strided_slice %168 {offsets = [0, 64], sizes = [8, 32], strides = [1, 1]} : vector<8x128xf32> to vector<8x32xf32>
    %172 = vector.extract_strided_slice %168 {offsets = [0, 96], sizes = [8, 32], strides = [1, 1]} : vector<8x128xf32> to vector<8x32xf32>
    %173 = arith.mulf %170, %142 : vector<8x32xf32>
    %174 = arith.mulf %169, %171 : vector<8x32xf32>
    %175 = arith.addf %173, %174 : vector<8x32xf32>
    %176 = math.tanh %175 : vector<8x32xf32>
    %177 = arith.mulf %172, %176 : vector<8x32xf32>
    %178 = vector.extract_strided_slice %10 {offsets = [40, 0], sizes = [8, 128], strides = [1, 1]} : vector<64x128xf32> to vector<8x128xf32>
    %cst_31 = arith.constant dense<0.000000e+00> : vector<8x128xf32>
    %179 = tpu.matmul %160, %23, %cst_31 {dimension_numbers = #tpu.dot_dimension_numbers<[1], [0], [0], [1], [0, 0, 1, 1], [], []>} : vector<8x32xf32>, vector<32x128xf32>, vector<8x128xf32> -> vector<8x128xf32>
    %180 = arith.addf %178, %179 : vector<8x128xf32>
    %181 = arith.mulf %180, %19 : vector<8x128xf32>
    %182 = math.tanh %181 : vector<8x128xf32>
    %183 = arith.mulf %19, %182 : vector<8x128xf32>
    %184 = arith.addf %183, %22 : vector<8x128xf32>
    %185 = vector.extract_strided_slice %184 {offsets = [0, 0], sizes = [8, 32], strides = [1, 1]} : vector<8x128xf32> to vector<8x32xf32>
    %186 = vector.extract_strided_slice %184 {offsets = [0, 32], sizes = [8, 32], strides = [1, 1]} : vector<8x128xf32> to vector<8x32xf32>
    %187 = vector.extract_strided_slice %184 {offsets = [0, 64], sizes = [8, 32], strides = [1, 1]} : vector<8x128xf32> to vector<8x32xf32>
    %188 = vector.extract_strided_slice %184 {offsets = [0, 96], sizes = [8, 32], strides = [1, 1]} : vector<8x128xf32> to vector<8x32xf32>
    %189 = arith.mulf %186, %158 : vector<8x32xf32>
    %190 = arith.mulf %185, %187 : vector<8x32xf32>
    %191 = arith.addf %189, %190 : vector<8x32xf32>
    %192 = math.tanh %191 : vector<8x32xf32>
    %193 = arith.mulf %188, %192 : vector<8x32xf32>
    %cst_32 = arith.constant dense<0.000000e+00> : vector<8x128xf32>
    %194 = tpu.matmul %160, %24, %cst_32 {dimension_numbers = #tpu.dot_dimension_numbers<[1], [0], [0], [1], [0, 0, 1, 1], [], []>} : vector<8x32xf32>, vector<32x128xf32>, vector<8x128xf32> -> vector<8x128xf32>
    %cst_33 = arith.constant dense<0.000000e+00> : vector<8x128xf32>
    %195 = tpu.matmul %177, %25, %cst_33 {dimension_numbers = #tpu.dot_dimension_numbers<[1], [0], [0], [1], [0, 0, 1, 1], [], []>} : vector<8x32xf32>, vector<32x128xf32>, vector<8x128xf32> -> vector<8x128xf32>
    %196 = arith.addf %194, %195 : vector<8x128xf32>
    %197 = arith.addf %196, %28 : vector<8x128xf32>
    %198 = arith.mulf %197, %19 : vector<8x128xf32>
    %199 = math.tanh %198 : vector<8x128xf32>
    %200 = arith.mulf %19, %199 : vector<8x128xf32>
    %201 = arith.addf %200, %22 : vector<8x128xf32>
    %202 = vector.extract_strided_slice %201 {offsets = [0, 0], sizes = [8, 32], strides = [1, 1]} : vector<8x128xf32> to vector<8x32xf32>
    %203 = vector.extract_strided_slice %201 {offsets = [0, 32], sizes = [8, 32], strides = [1, 1]} : vector<8x128xf32> to vector<8x32xf32>
    %204 = vector.extract_strided_slice %201 {offsets = [0, 64], sizes = [8, 32], strides = [1, 1]} : vector<8x128xf32> to vector<8x32xf32>
    %205 = vector.extract_strided_slice %201 {offsets = [0, 96], sizes = [8, 32], strides = [1, 1]} : vector<8x128xf32> to vector<8x32xf32>
    %206 = arith.mulf %203, %175 : vector<8x32xf32>
    %207 = arith.mulf %202, %204 : vector<8x32xf32>
    %208 = arith.addf %206, %207 : vector<8x32xf32>
    %209 = math.tanh %208 : vector<8x32xf32>
    %210 = arith.mulf %205, %209 : vector<8x32xf32>
    %211 = vector.extract_strided_slice %10 {offsets = [48, 0], sizes = [8, 128], strides = [1, 1]} : vector<64x128xf32> to vector<8x128xf32>
    %cst_34 = arith.constant dense<0.000000e+00> : vector<8x128xf32>
    %212 = tpu.matmul %193, %23, %cst_34 {dimension_numbers = #tpu.dot_dimension_numbers<[1], [0], [0], [1], [0, 0, 1, 1], [], []>} : vector<8x32xf32>, vector<32x128xf32>, vector<8x128xf32> -> vector<8x128xf32>
    %213 = arith.addf %211, %212 : vector<8x128xf32>
    %214 = arith.mulf %213, %19 : vector<8x128xf32>
    %215 = math.tanh %214 : vector<8x128xf32>
    %216 = arith.mulf %19, %215 : vector<8x128xf32>
    %217 = arith.addf %216, %22 : vector<8x128xf32>
    %218 = vector.extract_strided_slice %217 {offsets = [0, 0], sizes = [8, 32], strides = [1, 1]} : vector<8x128xf32> to vector<8x32xf32>
    %219 = vector.extract_strided_slice %217 {offsets = [0, 32], sizes = [8, 32], strides = [1, 1]} : vector<8x128xf32> to vector<8x32xf32>
    %220 = vector.extract_strided_slice %217 {offsets = [0, 64], sizes = [8, 32], strides = [1, 1]} : vector<8x128xf32> to vector<8x32xf32>
    %221 = vector.extract_strided_slice %217 {offsets = [0, 96], sizes = [8, 32], strides = [1, 1]} : vector<8x128xf32> to vector<8x32xf32>
    %222 = arith.mulf %219, %191 : vector<8x32xf32>
    %223 = arith.mulf %218, %220 : vector<8x32xf32>
    %224 = arith.addf %222, %223 : vector<8x32xf32>
    %225 = math.tanh %224 : vector<8x32xf32>
    %226 = arith.mulf %221, %225 : vector<8x32xf32>
    %cst_35 = arith.constant dense<0.000000e+00> : vector<8x128xf32>
    %227 = tpu.matmul %193, %24, %cst_35 {dimension_numbers = #tpu.dot_dimension_numbers<[1], [0], [0], [1], [0, 0, 1, 1], [], []>} : vector<8x32xf32>, vector<32x128xf32>, vector<8x128xf32> -> vector<8x128xf32>
    %cst_36 = arith.constant dense<0.000000e+00> : vector<8x128xf32>
    %228 = tpu.matmul %210, %25, %cst_36 {dimension_numbers = #tpu.dot_dimension_numbers<[1], [0], [0], [1], [0, 0, 1, 1], [], []>} : vector<8x32xf32>, vector<32x128xf32>, vector<8x128xf32> -> vector<8x128xf32>
    %229 = arith.addf %227, %228 : vector<8x128xf32>
    %230 = arith.addf %229, %28 : vector<8x128xf32>
    %231 = arith.mulf %230, %19 : vector<8x128xf32>
    %232 = math.tanh %231 : vector<8x128xf32>
    %233 = arith.mulf %19, %232 : vector<8x128xf32>
    %234 = arith.addf %233, %22 : vector<8x128xf32>
    %235 = vector.extract_strided_slice %234 {offsets = [0, 0], sizes = [8, 32], strides = [1, 1]} : vector<8x128xf32> to vector<8x32xf32>
    %236 = vector.extract_strided_slice %234 {offsets = [0, 32], sizes = [8, 32], strides = [1, 1]} : vector<8x128xf32> to vector<8x32xf32>
    %237 = vector.extract_strided_slice %234 {offsets = [0, 64], sizes = [8, 32], strides = [1, 1]} : vector<8x128xf32> to vector<8x32xf32>
    %238 = vector.extract_strided_slice %234 {offsets = [0, 96], sizes = [8, 32], strides = [1, 1]} : vector<8x128xf32> to vector<8x32xf32>
    %239 = arith.mulf %236, %208 : vector<8x32xf32>
    %240 = arith.mulf %235, %237 : vector<8x32xf32>
    %241 = arith.addf %239, %240 : vector<8x32xf32>
    %242 = math.tanh %241 : vector<8x32xf32>
    %243 = arith.mulf %238, %242 : vector<8x32xf32>
    %244 = vector.extract_strided_slice %10 {offsets = [56, 0], sizes = [8, 128], strides = [1, 1]} : vector<64x128xf32> to vector<8x128xf32>
    %cst_37 = arith.constant dense<0.000000e+00> : vector<8x128xf32>
    %245 = tpu.matmul %226, %23, %cst_37 {dimension_numbers = #tpu.dot_dimension_numbers<[1], [0], [0], [1], [0, 0, 1, 1], [], []>} : vector<8x32xf32>, vector<32x128xf32>, vector<8x128xf32> -> vector<8x128xf32>
    %246 = arith.addf %244, %245 : vector<8x128xf32>
    %247 = arith.mulf %246, %19 : vector<8x128xf32>
    %248 = math.tanh %247 : vector<8x128xf32>
    %249 = arith.mulf %19, %248 : vector<8x128xf32>
    %250 = arith.addf %249, %22 : vector<8x128xf32>
    %251 = vector.extract_strided_slice %250 {offsets = [0, 0], sizes = [8, 32], strides = [1, 1]} : vector<8x128xf32> to vector<8x32xf32>
    %252 = vector.extract_strided_slice %250 {offsets = [0, 32], sizes = [8, 32], strides = [1, 1]} : vector<8x128xf32> to vector<8x32xf32>
    %253 = vector.extract_strided_slice %250 {offsets = [0, 64], sizes = [8, 32], strides = [1, 1]} : vector<8x128xf32> to vector<8x32xf32>
    %254 = vector.extract_strided_slice %250 {offsets = [0, 96], sizes = [8, 32], strides = [1, 1]} : vector<8x128xf32> to vector<8x32xf32>
    %255 = arith.mulf %252, %224 : vector<8x32xf32>
    %256 = arith.mulf %251, %253 : vector<8x32xf32>
    %257 = arith.addf %255, %256 : vector<8x32xf32>
    %258 = math.tanh %257 : vector<8x32xf32>
    %259 = arith.mulf %254, %258 : vector<8x32xf32>
    %cst_38 = arith.constant dense<0.000000e+00> : vector<8x128xf32>
    %260 = tpu.matmul %226, %24, %cst_38 {dimension_numbers = #tpu.dot_dimension_numbers<[1], [0], [0], [1], [0, 0, 1, 1], [], []>} : vector<8x32xf32>, vector<32x128xf32>, vector<8x128xf32> -> vector<8x128xf32>
    %cst_39 = arith.constant dense<0.000000e+00> : vector<8x128xf32>
    %261 = tpu.matmul %243, %25, %cst_39 {dimension_numbers = #tpu.dot_dimension_numbers<[1], [0], [0], [1], [0, 0, 1, 1], [], []>} : vector<8x32xf32>, vector<32x128xf32>, vector<8x128xf32> -> vector<8x128xf32>
    %262 = arith.addf %260, %261 : vector<8x128xf32>
    %263 = arith.addf %262, %28 : vector<8x128xf32>
    %264 = arith.mulf %263, %19 : vector<8x128xf32>
    %265 = math.tanh %264 : vector<8x128xf32>
    %266 = arith.mulf %19, %265 : vector<8x128xf32>
    %267 = arith.addf %266, %22 : vector<8x128xf32>
    %268 = vector.extract_strided_slice %267 {offsets = [0, 0], sizes = [8, 32], strides = [1, 1]} : vector<8x128xf32> to vector<8x32xf32>
    %269 = vector.extract_strided_slice %267 {offsets = [0, 32], sizes = [8, 32], strides = [1, 1]} : vector<8x128xf32> to vector<8x32xf32>
    %270 = vector.extract_strided_slice %267 {offsets = [0, 64], sizes = [8, 32], strides = [1, 1]} : vector<8x128xf32> to vector<8x32xf32>
    %271 = vector.extract_strided_slice %267 {offsets = [0, 96], sizes = [8, 32], strides = [1, 1]} : vector<8x128xf32> to vector<8x32xf32>
    %272 = arith.mulf %269, %241 : vector<8x32xf32>
    %273 = arith.mulf %268, %270 : vector<8x32xf32>
    %274 = arith.addf %272, %273 : vector<8x32xf32>
    %275 = math.tanh %274 : vector<8x32xf32>
    %276 = arith.mulf %271, %275 : vector<8x32xf32>
    %cst_40 = arith.constant dense<0.000000e+00> : vector<8x128xf32>
    %277 = tpu.matmul %259, %24, %cst_40 {dimension_numbers = #tpu.dot_dimension_numbers<[1], [0], [0], [1], [0, 0, 1, 1], [], []>} : vector<8x32xf32>, vector<32x128xf32>, vector<8x128xf32> -> vector<8x128xf32>
    %cst_41 = arith.constant dense<0.000000e+00> : vector<8x128xf32>
    %278 = tpu.matmul %276, %25, %cst_41 {dimension_numbers = #tpu.dot_dimension_numbers<[1], [0], [0], [1], [0, 0, 1, 1], [], []>} : vector<8x32xf32>, vector<32x128xf32>, vector<8x128xf32> -> vector<8x128xf32>
    %279 = arith.addf %277, %278 : vector<8x128xf32>
    %280 = arith.addf %279, %28 : vector<8x128xf32>
    %281 = arith.mulf %280, %19 : vector<8x128xf32>
    %282 = math.tanh %281 : vector<8x128xf32>
    %283 = arith.mulf %19, %282 : vector<8x128xf32>
    %284 = arith.addf %283, %22 : vector<8x128xf32>
    %285 = vector.extract_strided_slice %284 {offsets = [0, 0], sizes = [8, 32], strides = [1, 1]} : vector<8x128xf32> to vector<8x32xf32>
    %286 = vector.extract_strided_slice %284 {offsets = [0, 32], sizes = [8, 32], strides = [1, 1]} : vector<8x128xf32> to vector<8x32xf32>
    %287 = vector.extract_strided_slice %284 {offsets = [0, 64], sizes = [8, 32], strides = [1, 1]} : vector<8x128xf32> to vector<8x32xf32>
    %288 = vector.extract_strided_slice %284 {offsets = [0, 96], sizes = [8, 32], strides = [1, 1]} : vector<8x128xf32> to vector<8x32xf32>
    %289 = arith.mulf %286, %274 : vector<8x32xf32>
    %290 = arith.mulf %285, %287 : vector<8x32xf32>
    %291 = arith.addf %289, %290 : vector<8x32xf32>
    %292 = math.tanh %291 : vector<8x32xf32>
    %293 = arith.mulf %288, %292 : vector<8x32xf32>
    %294 = vector.extract_strided_slice %259 {offsets = [0, 0], sizes = [2, 32], strides = [1, 1]} : vector<8x32xf32> to vector<2x32xf32>
    %c0_42 = arith.constant 0 : index
    %c0_43 = arith.constant 0 : index
    %c0_44 = arith.constant 0 : index
    %295 = vector.load %arg7[%c0_42, %c0_43, %c0_44] : memref<2x2x32xf32, #tpu.memory_space<vmem>>, vector<1x2x32xf32>
    %296 = vector.shape_cast %295 : vector<1x2x32xf32> to vector<2x32xf32>
    %297 = vector.shape_cast %294 : vector<2x32xf32> to vector<1x2x32xf32>
    tpu.vector_store %arg7[%c0_42, %c0_43, %c0_44], %297 {strides = array<i32>} : memref<2x2x32xf32, #tpu.memory_space<vmem>>, vector<1x2x32xf32>,
    %298 = vector.extract_strided_slice %293 {offsets = [0, 0], sizes = [2, 32], strides = [1, 1]} : vector<8x32xf32> to vector<2x32xf32>
    %c1 = arith.constant 1 : index
    %c0_45 = arith.constant 0 : index
    %c0_46 = arith.constant 0 : index
    %299 = vector.load %arg7[%c1, %c0_45, %c0_46] : memref<2x2x32xf32, #tpu.memory_space<vmem>>, vector<1x2x32xf32>
    %300 = vector.shape_cast %299 : vector<1x2x32xf32> to vector<2x32xf32>
    %301 = vector.shape_cast %298 : vector<2x32xf32> to vector<1x2x32xf32>
    tpu.vector_store %arg7[%c1, %c0_45, %c0_46], %301 {strides = array<i32>} : memref<2x2x32xf32, #tpu.memory_space<vmem>>, vector<1x2x32xf32>,
    %302 = vector.extract_strided_slice %257 {offsets = [0, 0], sizes = [2, 32], strides = [1, 1]} : vector<8x32xf32> to vector<2x32xf32>
    %c0_47 = arith.constant 0 : index
    %c0_48 = arith.constant 0 : index
    %c0_49 = arith.constant 0 : index
    %303 = vector.load %arg8[%c0_47, %c0_48, %c0_49] : memref<2x2x32xf32, #tpu.memory_space<vmem>>, vector<1x2x32xf32>
    %304 = vector.shape_cast %303 : vector<1x2x32xf32> to vector<2x32xf32>
    %305 = vector.shape_cast %302 : vector<2x32xf32> to vector<1x2x32xf32>
    tpu.vector_store %arg8[%c0_47, %c0_48, %c0_49], %305 {strides = array<i32>} : memref<2x2x32xf32, #tpu.memory_space<vmem>>, vector<1x2x32xf32>,
    %306 = vector.extract_strided_slice %291 {offsets = [0, 0], sizes = [2, 32], strides = [1, 1]} : vector<8x32xf32> to vector<2x32xf32>
    %c1_50 = arith.constant 1 : index
    %c0_51 = arith.constant 0 : index
    %c0_52 = arith.constant 0 : index
    %307 = vector.load %arg8[%c1_50, %c0_51, %c0_52] : memref<2x2x32xf32, #tpu.memory_space<vmem>>, vector<1x2x32xf32>
    %308 = vector.shape_cast %307 : vector<1x2x32xf32> to vector<2x32xf32>
    %309 = vector.shape_cast %306 : vector<2x32xf32> to vector<1x2x32xf32>
    tpu.vector_store %arg8[%c1_50, %c0_51, %c0_52], %309 {strides = array<i32>} : memref<2x2x32xf32, #tpu.memory_space<vmem>>, vector<1x2x32xf32>,
    return
  }
}

</mosaic_0001>

<llo_original>
// kernel: tpu_custom_call.1
$region0: #{tpu_custom_call.1}
  #allocation0 [shape = 'u32[]', space=smem, size = 0x4, offset = 0x4, fixed_abs, tag = 'smem constant byte address 0x4 - core index']
  #allocation1 [shape = 'u32[144,128]{1,0:T(1,128)}', space=vmem, size = 0x12000, scoped, tag = 'internal scratch']
  %s0 = inlined_call_operand.vmem [shape: s32[64,1], index: 0, kind: input, shape index: {}]
  %s1 = inlined_call_operand.vmem [shape: f32[64,128], index: 1, kind: input, shape index: {}]
  %s2 = inlined_call_operand.hbm [shape: f32[32,128], index: 2, kind: input, shape index: {}]
  %s3 = inlined_call_operand.vmem [shape: f32[1,128], index: 3, kind: input, shape index: {}]
  %s4 = inlined_call_operand.hbm [shape: f32[32,128], index: 4, kind: input, shape index: {}]
  %s5 = inlined_call_operand.hbm [shape: f32[32,128], index: 5, kind: input, shape index: {}]
  %s6 = inlined_call_operand.vmem [shape: f32[1,128], index: 6, kind: input, shape index: {}]
  %s7 = inlined_call_operand.hbm [shape: f32[2,2,32], index: 7, kind: output, shape index: {0}]
  %s8 = inlined_call_operand.hbm [shape: f32[2,2,32], index: 8, kind: output, shape index: {1}]
  %9 = xla_tuple %s7, %s8
  %s10 = sld [smem:[#allocation0]]
  $region58: #{tpu_custom_call.1} parent=0
    _
  %s12 = ssub.s32 1, %s10
  %s13 = scalar_select 0, %s12, %s10
  $region1: #{tpu_custom_call.1} parent=0
    #allocation2 [shape = 'u8[16384]{0}', space=vmem, size = 0x4000, scoped, tag = 'input window, operand 2, single buffered']
    #allocation3 [shape = 's32[1]{0}', space=sflag, size = 0x4, scoped, tag = 'scoped memory for tpu_custom_call.1']
    #allocation4 [shape = 's32[1]{0}', space=sflag, size = 0x4, scoped, tag = 'scoped memory for tpu_custom_call.1']
    #allocation5 [shape = 'u8[16384]{0}', space=vmem, size = 0x4000, scoped, tag = 'input window, operand 4, single buffered']
    #allocation6 [shape = 's32[1]{0}', space=sflag, size = 0x4, scoped, tag = 'scoped memory for tpu_custom_call.1']
    #allocation7 [shape = 'u8[16384]{0}', space=vmem, size = 0x4000, scoped, tag = 'input window, operand 5, single buffered']
    #allocation8 [shape = 'u8[2048]{0}', space=vmem, size = 0x800, scoped, tag = 'output window, operand 0, single buffered']
    #allocation9 [shape = 'u8[2048]{0}', space=vmem, size = 0x800, scoped, tag = 'output window, operand 1, single buffered']
    #allocation10 [shape = 's32[1]{0}', space=sflag, size = 0x4, scoped, tag = 'scoped memory for tpu_custom_call.1']
    %14 = vsyncpa [#allocation3], 0
    %15 = vsyncpa [#allocation6], 0
    %16 = vsyncpa [#allocation4], 0
    %17 = vsyncpa [#allocation10], 0
    // Predicated region
    $region2: #{tpu_custom_call.1} parent=1 // pred_check
      _
    $region3: #{tpu_custom_call.1} parent=1 // pred_check_branch
      %19 = sbr.rel (0) target = $region5
    $region4: #{tpu_custom_call.1} parent=1 // pred_region
      _
    $region5: #{tpu_custom_call.1} parent=1 // pred_fallthru
      _
    // Predicated region
    $region6: #{tpu_custom_call.1} parent=1 // pred_check
      _
    $region7: #{tpu_custom_call.1} parent=1 // pred_check_branch
      %21 = sbr.rel (0) target = $region9
    $region8: #{tpu_custom_call.1} parent=1 // pred_region
      _
    $region9: #{tpu_custom_call.1} parent=1 // pred_fallthru
      _
    // Predicated region
    $region10: #{tpu_custom_call.1} parent=1 // pred_check
      _
    $region11: #{tpu_custom_call.1} parent=1 // pred_check_branch
      %23 = sbr.rel (0) target = $region13
    $region12: #{tpu_custom_call.1} parent=1 // pred_region
      %s25 = ssub.s32 512, 512
      %26 = vsyncadd [#allocation3], %s25
      %s27 = sshll.u32 [#allocation2], 4
      %s28 = int_to_ptr.vmem [resolvable:$true] %s27
      %33 = dma.hbm_to_vmem [thread:$0]  %s2, 512, %s28, [#allocation3], 128, 128, 8
    $region13: #{tpu_custom_call.1} parent=1 // pred_fallthru
      _
    // Predicated region
    $region14: #{tpu_custom_call.1} parent=1 // pred_check
      _
    $region15: #{tpu_custom_call.1} parent=1 // pred_check_branch
      %35 = sbr.rel (0) target = $region17
    $region16: #{tpu_custom_call.1} parent=1 // pred_region
      _
    $region17: #{tpu_custom_call.1} parent=1 // pred_fallthru
      _
    // Predicated region
    $region18: #{tpu_custom_call.1} parent=1 // pred_check
      _
    $region19: #{tpu_custom_call.1} parent=1 // pred_check_branch
      %37 = sbr.rel (0) target = $region21
    $region20: #{tpu_custom_call.1} parent=1 // pred_region
      %s39 = ssub.s32 512, 512
      %40 = vsyncadd [#allocation6], %s39
      %s41 = sshll.u32 [#allocation5], 4
      %s42 = int_to_ptr.vmem [resolvable:$true] %s41
      %47 = dma.hbm_to_vmem [thread:$0]  %s4, 512, %s42, [#allocation6], 128, 128, 8
    $region21: #{tpu_custom_call.1} parent=1 // pred_fallthru
      _
    // Predicated region
    $region22: #{tpu_custom_call.1} parent=1 // pred_check
      _
    $region23: #{tpu_custom_call.1} parent=1 // pred_check_branch
      %49 = sbr.rel (0) target = $region25
    $region24: #{tpu_custom_call.1} parent=1 // pred_region
      %s51 = ssub.s32 512, 512
      %52 = vsyncadd [#allocation6], %s51
      %s53 = sshll.u32 [#allocation7], 4
      %s54 = int_to_ptr.vmem [resolvable:$true] %s53
      %59 = dma.hbm_to_vmem [thread:$0]  %s5, 512, %s54, [#allocation6], 128, 128, 8
    $region25: #{tpu_custom_call.1} parent=1 // pred_fallthru
      _
    // Predicated region
    $region26: #{tpu_custom_call.1} parent=1 // pred_check
      _
    $region27: #{tpu_custom_call.1} parent=1 // pred_check_branch
      %61 = sbr.rel (0) target = $region29
    $region28: #{tpu_custom_call.1} parent=1 // pred_region
      _
    $region29: #{tpu_custom_call.1} parent=1 // pred_fallthru
      _
    // Predicated region
    $region30: #{tpu_custom_call.1} parent=1 // pred_check
      _
    $region31: #{tpu_custom_call.1} parent=1 // pred_check_branch
      %63 = sbr.rel (0) target = $region33
    $region32: #{tpu_custom_call.1} parent=1 // pred_region
      %64 = dma.done [#allocation3], 512
    $region33: #{tpu_custom_call.1} parent=1 // pred_fallthru
      _
    // Predicated region
    $region34: #{tpu_custom_call.1} parent=1 // pred_check
      _
    $region35: #{tpu_custom_call.1} parent=1 // pred_check_branch
      %66 = sbr.rel (0) target = $region37
    $region36: #{tpu_custom_call.1} parent=1 // pred_region
      %67 = dma.done [#allocation6], 512
    $region37: #{tpu_custom_call.1} parent=1 // pred_fallthru
      _
    // Predicated region
    $region38: #{tpu_custom_call.1} parent=1 // pred_check
      _
    $region39: #{tpu_custom_call.1} parent=1 // pred_check_branch
      %69 = sbr.rel (0) target = $region41
    $region40: #{tpu_custom_call.1} parent=1 // pred_region
      %70 = dma.done [#allocation6], 512
    $region41: #{tpu_custom_call.1} parent=1 // pred_fallthru
      _
    %v71 = vld [vmem:[%s0] sm:$0xff]
    %v72 = vld [vmem:[%s0 + $0x8] sm:$0xff]
    %v73 = vld [vmem:[%s0 + $0x10] sm:$0xff]
    %v74 = vld [vmem:[%s0 + $0x18] sm:$0xff]
    %v75 = vld [vmem:[%s0 + $0x20] sm:$0xff]
    %v76 = vld [vmem:[%s0 + $0x28] sm:$0xff]
    %v77 = vld [vmem:[%s0 + $0x30] sm:$0xff]
    %v78 = vld [vmem:[%s0 + $0x38] sm:$0xff]
    %v79 = vlaneseq
    %v80 = vand.u32 %v79, 127
    %81 = vset.pattern.permute.xlu0 0
    %82 = vperm.xlu0 %81, %v71
    %v83 = vpop.permute.xlu0 %82
    %84 = vset.pattern.permute.xlu0 0
    %85 = vperm.xlu0 %84, %v72
    %v86 = vpop.permute.xlu0 %85
    %87 = vset.pattern.permute.xlu0 0
    %88 = vperm.xlu0 %87, %v73
    %v89 = vpop.permute.xlu0 %88
    %90 = vset.pattern.permute.xlu0 0
    %91 = vperm.xlu0 %90, %v74
    %v92 = vpop.permute.xlu0 %91
    %93 = vset.pattern.permute.xlu0 0
    %94 = vperm.xlu0 %93, %v75
    %v95 = vpop.permute.xlu0 %94
    %96 = vset.pattern.permute.xlu0 0
    %97 = vperm.xlu0 %96, %v76
    %v98 = vpop.permute.xlu0 %97
    %99 = vset.pattern.permute.xlu0 0
    %100 = vperm.xlu0 %99, %v77
    %v101 = vpop.permute.xlu0 %100
    %102 = vset.pattern.permute.xlu0 0
    %103 = vperm.xlu0 %102, %v78
    %v104 = vpop.permute.xlu0 %103
    %vm105 = vcmp.eq.s32.totalorder %v80, %v83
    %vm106 = vcmp.eq.s32.totalorder %v80, %v86
    %vm107 = vcmp.eq.s32.totalorder %v80, %v89
    %vm108 = vcmp.eq.s32.totalorder %v80, %v92
    %vm109 = vcmp.eq.s32.totalorder %v80, %v95
    %vm110 = vcmp.eq.s32.totalorder %v80, %v98
    %vm111 = vcmp.eq.s32.totalorder %v80, %v101
    %vm112 = vcmp.eq.s32.totalorder %v80, %v104
    %v113 = vsel %vm105, 1, 0
    %v114 = vsel %vm106, 1, 0
    %v115 = vsel %vm107, 1, 0
    %v116 = vsel %vm108, 1, 0
    %v117 = vsel %vm109, 1, 0
    %v118 = vsel %vm110, 1, 0
    %v119 = vsel %vm111, 1, 0
    %v120 = vsel %vm112, 1, 0
    %v121 = vcvt.s32.f32 %v113
    %v122 = vcvt.s32.f32 %v114
    %v123 = vcvt.s32.f32 %v115
    %v124 = vcvt.s32.f32 %v116
    %v125 = vcvt.s32.f32 %v117
    %v126 = vcvt.s32.f32 %v118
    %v127 = vcvt.s32.f32 %v119
    %v128 = vcvt.s32.f32 %v120
    %v129 = vld [vmem:[%s1] sm:$0xff]
    %v130 = vld [vmem:[%s1 + $0x8] sm:$0xff]
    %v131 = vld [vmem:[%s1 + $0x10] sm:$0xff]
    %v132 = vld [vmem:[%s1 + $0x18] sm:$0xff]
    %v133 = vld [vmem:[%s1 + $0x20] sm:$0xff]
    %v134 = vld [vmem:[%s1 + $0x28] sm:$0xff]
    %v135 = vld [vmem:[%s1 + $0x30] sm:$0xff]
    %v136 = vld [vmem:[%s1 + $0x38] sm:$0xff]
    %v137 = vld [vmem:[%s3] sm:$0x1]
    %v139 = vlaneseq
    %v140 = vshrl.u32 %v139, 7
    %v141 = vsub.s32 0, %v140
    %v142 = vrot.slane %v137, %v141
    %vm144 = vcmask 523264
    %v146 = vsel %vm144, %v121, 0
    %v149 = vsel %vm144, %v122, 0
    %v152 = vsel %vm144, %v123, 0
    %v155 = vsel %vm144, %v124, 0
    %v158 = vsel %vm144, %v125, 0
    %v161 = vsel %vm144, %v126, 0
    %v164 = vsel %vm144, %v127, 0
    %v167 = vsel %vm144, %v128, 0
    %169 = vmatprep.subr.mxu0 0.0
    %170 = vmatpush1.msra.mxu0 0.0
    %171 = vmatprep.subr.mxu0 0.0
    %172 = vmatpush1.msra.mxu0 0.0
    %173 = vmatprep.subr.mxu0 0.0
    %174 = vmatpush1.msra.mxu0 0.0
    %175 = vmatprep.subr.mxu0 0.0
    %176 = vmatpush1.msra.mxu0 0.0
    %177 = vmatprep.subr.mxu0 0.0
    %178 = vmatpush1.msra.mxu0 0.0
    %179 = vmatprep.subr.mxu0 0.0
    %180 = vmatpush1.msra.mxu0 0.0
    %181 = vmatprep.subr.mxu0 0.0
    %182 = vmatpush1.msra.mxu0 0.0
    %183 = vmatprep.subr.mxu0 0.0
    %184 = vmatpush1.msra.mxu0 0.0
    %185 = vmatprep.subr.mxu0 0.0
    %186 = vmatpush1.msra.mxu0 %v136
    %187 = vmatprep.subr.mxu0 0.0
    %188 = vmatpush1.msra.mxu0 %v135
    %189 = vmatprep.subr.mxu0 0.0
    %190 = vmatpush1.msra.mxu0 %v134
    %191 = vmatprep.subr.mxu0 0.0
    %192 = vmatpush1.msra.mxu0 %v133
    %193 = vmatprep.subr.mxu0 0.0
    %194 = vmatpush1.msra.mxu0 %v132
    %195 = vmatprep.subr.mxu0 0.0
    %196 = vmatpush1.msra.mxu0 %v131
    %197 = vmatprep.subr.mxu0 0.0
    %198 = vmatpush1.msra.mxu0 %v130
    %199 = vmatprep.subr.mxu0 0.0
    %200 = vmatpush1.msra.mxu0 %v129
    %201 = vmatprep.subr.mxu0 0.0
    %202 = vmatpush2.msra.mxu0 0.0
    %203 = vmatprep.subr.mxu0 0.0
    %204 = vmatpush2.msra.mxu0 0.0
    %205 = vmatprep.subr.mxu0 0.0
    %206 = vmatpush2.msra.mxu0 0.0
    %207 = vmatprep.subr.mxu0 0.0
    %208 = vmatpush2.msra.mxu0 0.0
    %209 = vmatprep.subr.mxu0 0.0
    %210 = vmatpush2.msra.mxu0 0.0
    %211 = vmatprep.subr.mxu0 0.0
    %212 = vmatpush2.msra.mxu0 0.0
    %213 = vmatprep.subr.mxu0 0.0
    %214 = vmatpush2.msra.mxu0 0.0
    %215 = vmatprep.subr.mxu0 0.0
    %216 = vmatpush2.msra.mxu0 0.0
    %217 = vmatprep.subr.mxu0 0.0
    %218 = vmatpush2.msra.mxu0 0.0
    %219 = vmatprep.subr.mxu0 0.0
    %220 = vmatpush2.msra.mxu0 0.0
    %221 = vmatprep.subr.mxu0 0.0
    %222 = vmatpush2.msra.mxu0 0.0
    %223 = vmatprep.subr.mxu0 0.0
    %224 = vmatpush2.msra.mxu0 0.0
    %225 = vmatprep.subr.mxu0 0.0
    %226 = vmatpush2.msra.mxu0 0.0
    %227 = vmatprep.subr.mxu0 0.0
    %228 = vmatpush2.msra.mxu0 0.0
    %229 = vmatprep.subr.mxu0 0.0
    %230 = vmatpush2.msra.mxu0 0.0
    %231 = vmatprep.subr.mxu0 0.0
    %232 = vmatpush2.msra.mxu0 0.0
    %233 = vmatprep.mubr.f32.mxu0 0.0
    %234 = vmatmul.mubr.f32.gmra.mxu0 %v146
    %v235 = vpop.f32.mrf.mxu0
    %v236 = vadd.f32 %v142, %v235
    %v237 = vpop.f32.mrf.mxu0
    %238 = vmatprep.mubr.f32.mxu0 0.0
    %239 = vmatmul.mubr.f32.gmra.mxu0 %v149
    %v240 = vpop.f32.mrf.mxu0
    %v241 = vadd.f32 %v142, %v240
    %v242 = vpop.f32.mrf.mxu0
    %243 = vmatprep.mubr.f32.mxu0 0.0
    %244 = vmatmul.mubr.f32.gmra.mxu0 %v152
    %v245 = vpop.f32.mrf.mxu0
    %v246 = vadd.f32 %v142, %v245
    %v247 = vpop.f32.mrf.mxu0
    %248 = vmatprep.mubr.f32.mxu0 0.0
    %249 = vmatmul.mubr.f32.gmra.mxu0 %v155
    %v250 = vpop.f32.mrf.mxu0
    %v251 = vadd.f32 %v142, %v250
    %v252 = vpop.f32.mrf.mxu0
    %253 = vmatprep.mubr.f32.mxu0 0.0
    %254 = vmatmul.mubr.f32.gmra.mxu0 %v158
    %v255 = vpop.f32.mrf.mxu0
    %v256 = vadd.f32 %v142, %v255
    %v257 = vpop.f32.mrf.mxu0
    %258 = vmatprep.mubr.f32.mxu0 0.0
    %259 = vmatmul.mubr.f32.gmra.mxu0 %v161
    %v260 = vpop.f32.mrf.mxu0
    %v261 = vadd.f32 %v142, %v260
    %v262 = vpop.f32.mrf.mxu0
    %263 = vmatprep.mubr.f32.mxu0 0.0
    %264 = vmatmul.mubr.f32.gmra.mxu0 %v164
    %v265 = vpop.f32.mrf.mxu0
    %v266 = vadd.f32 %v142, %v265
    %v267 = vpop.f32.mrf.mxu0
    %268 = vmatprep.mubr.f32.mxu0 0.0
    %269 = vmatmul.mubr.f32.gmra.mxu0 %v167
    %v270 = vpop.f32.mrf.mxu0
    %v271 = vadd.f32 %v142, %v270
    %v272 = vpop.f32.mrf.mxu0
    %273 = vdwg.mxu0
    %vm274 = vcmp.ge.s32.totalorder %v80, 64
    %vm275 = vcmp.lt.s32.totalorder %v80, 96
    %vm276 = vmand %vm274, %vm275
    %v277 = vsel %vm276, 1.0, 0.5
    %v278 = vsel %vm276, 0.0, 0.5
    %v279 = vld [vmem:[#allocation2] sm:$0xff]
    %v280 = vld [vmem:[#allocation2 + $0x8] sm:$0xff]
    %v281 = vld [vmem:[#allocation2 + $0x10] sm:$0xff]
    %v282 = vld [vmem:[#allocation2 + $0x18] sm:$0xff]
    %v283 = vld [vmem:[#allocation5] sm:$0xff]
    %v284 = vld [vmem:[#allocation5 + $0x8] sm:$0xff]
    %v285 = vld [vmem:[#allocation5 + $0x10] sm:$0xff]
    %v286 = vld [vmem:[#allocation5 + $0x18] sm:$0xff]
    %v287 = vld [vmem:[#allocation7] sm:$0xff]
    %v288 = vld [vmem:[#allocation7 + $0x8] sm:$0xff]
    %v289 = vld [vmem:[#allocation7 + $0x10] sm:$0xff]
    %v290 = vld [vmem:[#allocation7 + $0x18] sm:$0xff]
    %v291 = vld [vmem:[%s6] sm:$0x1]
    %v293 = vlaneseq
    %v294 = vshrl.u32 %v293, 7
    %v295 = vsub.s32 0, %v294
    %v296 = vrot.slane %v291, %v295
    %vm298 = vcmask 261120
    %v300 = vsel %vm298, 0.0, 0
    %302 = vmatprep.subr.mxu0 0.0
    %303 = vmatpush1.msra.mxu0 0.0
    %304 = vmatprep.subr.mxu0 0.0
    %305 = vmatpush1.msra.mxu0 0.0
    %306 = vmatprep.subr.mxu0 0.0
    %307 = vmatpush1.msra.mxu0 0.0
    %308 = vmatprep.subr.mxu0 0.0
    %309 = vmatpush1.msra.mxu0 0.0
    %310 = vmatprep.subr.mxu0 0.0
    %311 = vmatpush1.msra.mxu0 0.0
    %312 = vmatprep.subr.mxu0 0.0
    %313 = vmatpush1.msra.mxu0 0.0
    %314 = vmatprep.subr.mxu0 0.0
    %315 = vmatpush1.msra.mxu0 0.0
    %316 = vmatprep.subr.mxu0 0.0
    %317 = vmatpush1.msra.mxu0 0.0
    %318 = vmatprep.subr.mxu0 0.0
    %319 = vmatpush1.msra.mxu0 0.0
    %320 = vmatprep.subr.mxu0 0.0
    %321 = vmatpush1.msra.mxu0 0.0
    %322 = vmatprep.subr.mxu0 0.0
    %323 = vmatpush1.msra.mxu0 0.0
    %324 = vmatprep.subr.mxu0 0.0
    %325 = vmatpush1.msra.mxu0 0.0
    %326 = vmatprep.subr.mxu0 0.0
    %327 = vmatpush1.msra.mxu0 %v282
    %328 = vmatprep.subr.mxu0 0.0
    %329 = vmatpush1.msra.mxu0 %v281
    %330 = vmatprep.subr.mxu0 0.0
    %331 = vmatpush1.msra.mxu0 %v280
    %332 = vmatprep.subr.mxu0 0.0
    %333 = vmatpush1.msra.mxu0 %v279
    %334 = vmatprep.subr.mxu0 0.0
    %335 = vmatpush2.msra.mxu0 0.0
    %336 = vmatprep.subr.mxu0 0.0
    %337 = vmatpush2.msra.mxu0 0.0
    %338 = vmatprep.subr.mxu0 0.0
    %339 = vmatpush2.msra.mxu0 0.0
    %340 = vmatprep.subr.mxu0 0.0
    %341 = vmatpush2.msra.mxu0 0.0
    %342 = vmatprep.subr.mxu0 0.0
    %343 = vmatpush2.msra.mxu0 0.0
    %344 = vmatprep.subr.mxu0 0.0
    %345 = vmatpush2.msra.mxu0 0.0
    %346 = vmatprep.subr.mxu0 0.0
    %347 = vmatpush2.msra.mxu0 0.0
    %348 = vmatprep.subr.mxu0 0.0
    %349 = vmatpush2.msra.mxu0 0.0
    %350 = vmatprep.subr.mxu0 0.0
    %351 = vmatpush2.msra.mxu0 0.0
    %352 = vmatprep.subr.mxu0 0.0
    %353 = vmatpush2.msra.mxu0 0.0
    %354 = vmatprep.subr.mxu0 0.0
    %355 = vmatpush2.msra.mxu0 0.0
    %356 = vmatprep.subr.mxu0 0.0
    %357 = vmatpush2.msra.mxu0 0.0
    %358 = vmatprep.subr.mxu0 0.0
    %359 = vmatpush2.msra.mxu0 0.0
    %360 = vmatprep.subr.mxu0 0.0
    %361 = vmatpush2.msra.mxu0 0.0
    %362 = vmatprep.subr.mxu0 0.0
    %363 = vmatpush2.msra.mxu0 0.0
    %364 = vmatprep.subr.mxu0 0.0
    %365 = vmatpush2.msra.mxu0 0.0
    %366 = vmatprep.mubr.f32.mxu0 0.0
    %367 = vmatmul.mubr.f32.gmra.mxu0 %v300
    %v368 = vpop.f32.mrf.mxu0
    %v369 = vadd.f32 0.0, %v368
    %v370 = vpop.f32.mrf.mxu0
    %371 = vdwg.mxu0
    %v372 = vadd.f32 %v236, %v369
    %v373 = vmul.f32 %v372, %v277
    %v374 = vtanh.pop %v373
    %v375 = vmul.f32 %v277, %v374
    %v376 = vadd.f32 %v375, %v278
    %v377 = vmul.f32 %v376, 0.0
    %379 = vrot.lane.b32.xlu0 %v376, 64
    %v380 = vpop.permute.xlu0 %379
    %v382 = vmul.f32 %v376, %v380
    %384 = vrot.lane.b32.xlu0 %v382, 32
    %v385 = vpop.permute.xlu0 %384
    %v387 = vadd.f32 %v377, %v385
    %v388 = vtanh.pop %v387
    %390 = vrot.lane.b32.xlu0 %v388, 64
    %v391 = vpop.permute.xlu0 %390
    %v393 = vmul.f32 %v376, %v391
    %395 = vrot.lane.b32.xlu0 %v393, 32
    %v396 = vpop.permute.xlu0 %395
    %v397 = vsel %vm298, %v396, 0
    %399 = vmatprep.subr.mxu0 0.0
    %400 = vmatpush1.msra.mxu0 0.0
    %401 = vmatprep.subr.mxu0 0.0
    %402 = vmatpush1.msra.mxu0 0.0
    %403 = vmatprep.subr.mxu0 0.0
    %404 = vmatpush1.msra.mxu0 0.0
    %405 = vmatprep.subr.mxu0 0.0
    %406 = vmatpush1.msra.mxu0 0.0
    %407 = vmatprep.subr.mxu0 0.0
    %408 = vmatpush1.msra.mxu0 0.0
    %409 = vmatprep.subr.mxu0 0.0
    %410 = vmatpush1.msra.mxu0 0.0
    %411 = vmatprep.subr.mxu0 0.0
    %412 = vmatpush1.msra.mxu0 0.0
    %413 = vmatprep.subr.mxu0 0.0
    %414 = vmatpush1.msra.mxu0 0.0
    %415 = vmatprep.subr.mxu0 0.0
    %416 = vmatpush1.msra.mxu0 0.0
    %417 = vmatprep.subr.mxu0 0.0
    %418 = vmatpush1.msra.mxu0 0.0
    %419 = vmatprep.subr.mxu0 0.0
    %420 = vmatpush1.msra.mxu0 0.0
    %421 = vmatprep.subr.mxu0 0.0
    %422 = vmatpush1.msra.mxu0 0.0
    %423 = vmatprep.subr.mxu0 0.0
    %424 = vmatpush1.msra.mxu0 %v282
    %425 = vmatprep.subr.mxu0 0.0
    %426 = vmatpush1.msra.mxu0 %v281
    %427 = vmatprep.subr.mxu0 0.0
    %428 = vmatpush1.msra.mxu0 %v280
    %429 = vmatprep.subr.mxu0 0.0
    %430 = vmatpush1.msra.mxu0 %v279
    %431 = vmatprep.subr.mxu0 0.0
    %432 = vmatpush2.msra.mxu0 0.0
    %433 = vmatprep.subr.mxu0 0.0
    %434 = vmatpush2.msra.mxu0 0.0
    %435 = vmatprep.subr.mxu0 0.0
    %436 = vmatpush2.msra.mxu0 0.0
    %437 = vmatprep.subr.mxu0 0.0
    %438 = vmatpush2.msra.mxu0 0.0
    %439 = vmatprep.subr.mxu0 0.0
    %440 = vmatpush2.msra.mxu0 0.0
    %441 = vmatprep.subr.mxu0 0.0
    %442 = vmatpush2.msra.mxu0 0.0
    %443 = vmatprep.subr.mxu0 0.0
    %444 = vmatpush2.msra.mxu0 0.0
    %445 = vmatprep.subr.mxu0 0.0
    %446 = vmatpush2.msra.mxu0 0.0
    %447 = vmatprep.subr.mxu0 0.0
    %448 = vmatpush2.msra.mxu0 0.0
    %449 = vmatprep.subr.mxu0 0.0
    %450 = vmatpush2.msra.mxu0 0.0
    %451 = vmatprep.subr.mxu0 0.0
    %452 = vmatpush2.msra.mxu0 0.0
    %453 = vmatprep.subr.mxu0 0.0
    %454 = vmatpush2.msra.mxu0 0.0
    %455 = vmatprep.subr.mxu0 0.0
    %456 = vmatpush2.msra.mxu0 0.0
    %457 = vmatprep.subr.mxu0 0.0
    %458 = vmatpush2.msra.mxu0 0.0
    %459 = vmatprep.subr.mxu0 0.0
    %460 = vmatpush2.msra.mxu0 0.0
    %461 = vmatprep.subr.mxu0 0.0
    %462 = vmatpush2.msra.mxu0 0.0
    %463 = vmatprep.mubr.f32.mxu0 0.0
    %464 = vmatmul.mubr.f32.gmra.mxu0 %v397
    %v465 = vpop.f32.mrf.mxu0
    %v466 = vadd.f32 0.0, %v465
    %v467 = vpop.f32.mrf.mxu0
    %468 = vdwg.mxu0
    %v469 = vadd.f32 %v241, %v466
    %v470 = vmul.f32 %v469, %v277
    %v471 = vtanh.pop %v470
    %v472 = vmul.f32 %v277, %v471
    %v473 = vadd.f32 %v472, %v278
    %v474 = vmul.f32 %v473, %v387
    %476 = vrot.lane.b32.xlu0 %v473, 64
    %v477 = vpop.permute.xlu0 %476
    %v479 = vmul.f32 %v473, %v477
    %481 = vrot.lane.b32.xlu0 %v479, 32
    %v482 = vpop.permute.xlu0 %481
    %v484 = vadd.f32 %v474, %v482
    %v485 = vtanh.pop %v484
    %487 = vrot.lane.b32.xlu0 %v485, 64
    %v488 = vpop.permute.xlu0 %487
    %v490 = vmul.f32 %v473, %v488
    %491 = vmatprep.subr.mxu0 0.0
    %492 = vmatpush1.msra.mxu0 0.0
    %493 = vmatprep.subr.mxu0 0.0
    %494 = vmatpush1.msra.mxu0 0.0
    %495 = vmatprep.subr.mxu0 0.0
    %496 = vmatpush1.msra.mxu0 0.0
    %497 = vmatprep.subr.mxu0 0.0
    %498 = vmatpush1.msra.mxu0 0.0
    %499 = vmatprep.subr.mxu0 0.0
    %500 = vmatpush1.msra.mxu0 0.0
    %501 = vmatprep.subr.mxu0 0.0
    %502 = vmatpush1.msra.mxu0 0.0
    %503 = vmatprep.subr.mxu0 0.0
    %504 = vmatpush1.msra.mxu0 0.0
    %505 = vmatprep.subr.mxu0 0.0
    %506 = vmatpush1.msra.mxu0 0.0
    %507 = vmatprep.subr.mxu0 0.0
    %508 = vmatpush1.msra.mxu0 0.0
    %509 = vmatprep.subr.mxu0 0.0
    %510 = vmatpush1.msra.mxu0 0.0
    %511 = vmatprep.subr.mxu0 0.0
    %512 = vmatpush1.msra.mxu0 0.0
    %513 = vmatprep.subr.mxu0 0.0
    %514 = vmatpush1.msra.mxu0 0.0
    %515 = vmatprep.subr.mxu0 0.0
    %516 = vmatpush1.msra.mxu0 %v290
    %517 = vmatprep.subr.mxu0 0.0
    %518 = vmatpush1.msra.mxu0 %v289
    %519 = vmatprep.subr.mxu0 0.0
    %520 = vmatpush1.msra.mxu0 %v288
    %521 = vmatprep.subr.mxu0 0.0
    %522 = vmatpush1.msra.mxu0 %v287
    %523 = vmatprep.subr.mxu0 0.0
    %524 = vmatpush2.msra.mxu0 0.0
    %525 = vmatprep.subr.mxu0 0.0
    %526 = vmatpush2.msra.mxu0 0.0
    %527 = vmatprep.subr.mxu0 0.0
    %528 = vmatpush2.msra.mxu0 0.0
    %529 = vmatprep.subr.mxu0 0.0
    %530 = vmatpush2.msra.mxu0 0.0
    %531 = vmatprep.subr.mxu0 0.0
    %532 = vmatpush2.msra.mxu0 0.0
    %533 = vmatprep.subr.mxu0 0.0
    %534 = vmatpush2.msra.mxu0 0.0
    %535 = vmatprep.subr.mxu0 0.0
    %536 = vmatpush2.msra.mxu0 0.0
    %537 = vmatprep.subr.mxu0 0.0
    %538 = vmatpush2.msra.mxu0 0.0
    %539 = vmatprep.subr.mxu0 0.0
    %540 = vmatpush2.msra.mxu0 0.0
    %541 = vmatprep.subr.mxu0 0.0
    %542 = vmatpush2.msra.mxu0 0.0
    %543 = vmatprep.subr.mxu0 0.0
    %544 = vmatpush2.msra.mxu0 0.0
    %545 = vmatprep.subr.mxu0 0.0
    %546 = vmatpush2.msra.mxu0 0.0
    %547 = vmatprep.subr.mxu0 0.0
    %548 = vmatpush2.msra.mxu0 0.0
    %549 = vmatprep.subr.mxu0 0.0
    %550 = vmatpush2.msra.mxu0 0.0
    %551 = vmatprep.subr.mxu0 0.0
    %552 = vmatpush2.msra.mxu0 0.0
    %553 = vmatprep.subr.mxu0 0.0
    %554 = vmatpush2.msra.mxu0 0.0
    %555 = vmatprep.mubr.f32.mxu0 0.0
    %556 = vmatmul.mubr.f32.gmra.mxu0 %v300
    %v557 = vpop.f32.mrf.mxu0
    %v558 = vadd.f32 0.0, %v557
    %v559 = vpop.f32.mrf.mxu0
    %560 = vdwg.mxu0
    %561 = vmatprep.subr.mxu0 0.0
    %562 = vmatpush1.msra.mxu0 0.0
    %563 = vmatprep.subr.mxu0 0.0
    %564 = vmatpush1.msra.mxu0 0.0
    %565 = vmatprep.subr.mxu0 0.0
    %566 = vmatpush1.msra.mxu0 0.0
    %567 = vmatprep.subr.mxu0 0.0
    %568 = vmatpush1.msra.mxu0 0.0
    %569 = vmatprep.subr.mxu0 0.0
    %570 = vmatpush1.msra.mxu0 0.0
    %571 = vmatprep.subr.mxu0 0.0
    %572 = vmatpush1.msra.mxu0 0.0
    %573 = vmatprep.subr.mxu0 0.0
    %574 = vmatpush1.msra.mxu0 0.0
    %575 = vmatprep.subr.mxu0 0.0
    %576 = vmatpush1.msra.mxu0 0.0
    %577 = vmatprep.subr.mxu0 0.0
    %578 = vmatpush1.msra.mxu0 0.0
    %579 = vmatprep.subr.mxu0 0.0
    %580 = vmatpush1.msra.mxu0 0.0
    %581 = vmatprep.subr.mxu0 0.0
    %582 = vmatpush1.msra.mxu0 0.0
    %583 = vmatprep.subr.mxu0 0.0
    %584 = vmatpush1.msra.mxu0 0.0
    %585 = vmatprep.subr.mxu0 0.0
    %586 = vmatpush1.msra.mxu0 %v286
    %587 = vmatprep.subr.mxu0 0.0
    %588 = vmatpush1.msra.mxu0 %v285
    %589 = vmatprep.subr.mxu0 0.0
    %590 = vmatpush1.msra.mxu0 %v284
    %591 = vmatprep.subr.mxu0 0.0
    %592 = vmatpush1.msra.mxu0 %v283
    %593 = vmatprep.subr.mxu0 0.0
    %594 = vmatpush2.msra.mxu0 0.0
    %595 = vmatprep.subr.mxu0 0.0
    %596 = vmatpush2.msra.mxu0 0.0
    %597 = vmatprep.subr.mxu0 0.0
    %598 = vmatpush2.msra.mxu0 0.0
    %599 = vmatprep.subr.mxu0 0.0
    %600 = vmatpush2.msra.mxu0 0.0
    %601 = vmatprep.subr.mxu0 0.0
    %602 = vmatpush2.msra.mxu0 0.0
    %603 = vmatprep.subr.mxu0 0.0
    %604 = vmatpush2.msra.mxu0 0.0
    %605 = vmatprep.subr.mxu0 0.0
    %606 = vmatpush2.msra.mxu0 0.0
    %607 = vmatprep.subr.mxu0 0.0
    %608 = vmatpush2.msra.mxu0 0.0
    %609 = vmatprep.subr.mxu0 0.0
    %610 = vmatpush2.msra.mxu0 0.0
    %611 = vmatprep.subr.mxu0 0.0
    %612 = vmatpush2.msra.mxu0 0.0
    %613 = vmatprep.subr.mxu0 0.0
    %614 = vmatpush2.msra.mxu0 0.0
    %615 = vmatprep.subr.mxu0 0.0
    %616 = vmatpush2.msra.mxu0 0.0
    %617 = vmatprep.subr.mxu0 0.0
    %618 = vmatpush2.msra.mxu0 0.0
    %619 = vmatprep.subr.mxu0 0.0
    %620 = vmatpush2.msra.mxu0 0.0
    %621 = vmatprep.subr.mxu0 0.0
    %622 = vmatpush2.msra.mxu0 0.0
    %623 = vmatprep.subr.mxu0 0.0
    %624 = vmatpush2.msra.mxu0 0.0
    %625 = vmatprep.mubr.f32.mxu0 0.0
    %626 = vmatmul.mubr.f32.gmra.mxu0 %v397
    %v627 = vpop.f32.mrf.mxu0
    %v628 = vadd.f32 %v558, %v627
    %v629 = vpop.f32.mrf.mxu0
    %630 = vdwg.mxu0
    %v631 = vadd.f32 %v628, %v296
    %v632 = vmul.f32 %v631, %v277
    %v633 = vtanh.pop %v632
    %v634 = vmul.f32 %v277, %v633
    %v635 = vadd.f32 %v634, %v278
    %v636 = vmul.f32 %v635, 0.0
    %638 = vrot.lane.b32.xlu0 %v635, 64
    %v639 = vpop.permute.xlu0 %638
    %v641 = vmul.f32 %v635, %v639
    %643 = vrot.lane.b32.xlu0 %v641, 32
    %v644 = vpop.permute.xlu0 %643
    %v646 = vadd.f32 %v636, %v644
    %v647 = vtanh.pop %v646
    %649 = vrot.lane.b32.xlu0 %v647, 64
    %v650 = vpop.permute.xlu0 %649
    %v652 = vmul.f32 %v635, %v650
    %654 = vrot.lane.b32.xlu0 %v490, 32
    %v655 = vpop.permute.xlu0 %654
    %v656 = vsel %vm298, %v655, 0
    %658 = vmatprep.subr.mxu0 0.0
    %659 = vmatpush1.msra.mxu0 0.0
    %660 = vmatprep.subr.mxu0 0.0
    %661 = vmatpush1.msra.mxu0 0.0
    %662 = vmatprep.subr.mxu0 0.0
    %663 = vmatpush1.msra.mxu0 0.0
    %664 = vmatprep.subr.mxu0 0.0
    %665 = vmatpush1.msra.mxu0 0.0
    %666 = vmatprep.subr.mxu0 0.0
    %667 = vmatpush1.msra.mxu0 0.0
    %668 = vmatprep.subr.mxu0 0.0
    %669 = vmatpush1.msra.mxu0 0.0
    %670 = vmatprep.subr.mxu0 0.0
    %671 = vmatpush1.msra.mxu0 0.0
    %672 = vmatprep.subr.mxu0 0.0
    %673 = vmatpush1.msra.mxu0 0.0
    %674 = vmatprep.subr.mxu0 0.0
    %675 = vmatpush1.msra.mxu0 0.0
    %676 = vmatprep.subr.mxu0 0.0
    %677 = vmatpush1.msra.mxu0 0.0
    %678 = vmatprep.subr.mxu0 0.0
    %679 = vmatpush1.msra.mxu0 0.0
    %680 = vmatprep.subr.mxu0 0.0
    %681 = vmatpush1.msra.mxu0 0.0
    %682 = vmatprep.subr.mxu0 0.0
    %683 = vmatpush1.msra.mxu0 %v282
    %684 = vmatprep.subr.mxu0 0.0
    %685 = vmatpush1.msra.mxu0 %v281
    %686 = vmatprep.subr.mxu0 0.0
    %687 = vmatpush1.msra.mxu0 %v280
    %688 = vmatprep.subr.mxu0 0.0
    %689 = vmatpush1.msra.mxu0 %v279
    %690 = vmatprep.subr.mxu0 0.0
    %691 = vmatpush2.msra.mxu0 0.0
    %692 = vmatprep.subr.mxu0 0.0
    %693 = vmatpush2.msra.mxu0 0.0
    %694 = vmatprep.subr.mxu0 0.0
    %695 = vmatpush2.msra.mxu0 0.0
    %696 = vmatprep.subr.mxu0 0.0
    %697 = vmatpush2.msra.mxu0 0.0
    %698 = vmatprep.subr.mxu0 0.0
    %699 = vmatpush2.msra.mxu0 0.0
    %700 = vmatprep.subr.mxu0 0.0
    %701 = vmatpush2.msra.mxu0 0.0
    %702 = vmatprep.subr.mxu0 0.0
    %703 = vmatpush2.msra.mxu0 0.0
    %704 = vmatprep.subr.mxu0 0.0
    %705 = vmatpush2.msra.mxu0 0.0
    %706 = vmatprep.subr.mxu0 0.0
    %707 = vmatpush2.msra.mxu0 0.0
    %708 = vmatprep.subr.mxu0 0.0
    %709 = vmatpush2.msra.mxu0 0.0
    %710 = vmatprep.subr.mxu0 0.0
    %711 = vmatpush2.msra.mxu0 0.0
    %712 = vmatprep.subr.mxu0 0.0
    %713 = vmatpush2.msra.mxu0 0.0
    %714 = vmatprep.subr.mxu0 0.0
    %715 = vmatpush2.msra.mxu0 0.0
    %716 = vmatprep.subr.mxu0 0.0
    %717 = vmatpush2.msra.mxu0 0.0
    %718 = vmatprep.subr.mxu0 0.0
    %719 = vmatpush2.msra.mxu0 0.0
    %720 = vmatprep.subr.mxu0 0.0
    %721 = vmatpush2.msra.mxu0 0.0
    %722 = vmatprep.mubr.f32.mxu0 0.0
    %723 = vmatmul.mubr.f32.gmra.mxu0 %v656
    %v724 = vpop.f32.mrf.mxu0
    %v725 = vadd.f32 0.0, %v724
    %v726 = vpop.f32.mrf.mxu0
    %727 = vdwg.mxu0
    %v728 = vadd.f32 %v246, %v725
    %v729 = vmul.f32 %v728, %v277
    %v730 = vtanh.pop %v729
    %v731 = vmul.f32 %v277, %v730
    %v732 = vadd.f32 %v731, %v278
    %v733 = vmul.f32 %v732, %v484
    %735 = vrot.lane.b32.xlu0 %v732, 64
    %v736 = vpop.permute.xlu0 %735
    %v738 = vmul.f32 %v732, %v736
    %740 = vrot.lane.b32.xlu0 %v738, 32
    %v741 = vpop.permute.xlu0 %740
    %v743 = vadd.f32 %v733, %v741
    %v744 = vtanh.pop %v743
    %746 = vrot.lane.b32.xlu0 %v744, 64
    %v747 = vpop.permute.xlu0 %746
    %v749 = vmul.f32 %v732, %v747
    %751 = vrot.lane.b32.xlu0 %v652, 32
    %v752 = vpop.permute.xlu0 %751
    %v753 = vsel %vm298, %v752, 0
    %755 = vmatprep.subr.mxu0 0.0
    %756 = vmatpush1.msra.mxu0 0.0
    %757 = vmatprep.subr.mxu0 0.0
    %758 = vmatpush1.msra.mxu0 0.0
    %759 = vmatprep.subr.mxu0 0.0
    %760 = vmatpush1.msra.mxu0 0.0
    %761 = vmatprep.subr.mxu0 0.0
    %762 = vmatpush1.msra.mxu0 0.0
    %763 = vmatprep.subr.mxu0 0.0
    %764 = vmatpush1.msra.mxu0 0.0
    %765 = vmatprep.subr.mxu0 0.0
    %766 = vmatpush1.msra.mxu0 0.0
    %767 = vmatprep.subr.mxu0 0.0
    %768 = vmatpush1.msra.mxu0 0.0
    %769 = vmatprep.subr.mxu0 0.0
    %770 = vmatpush1.msra.mxu0 0.0
    %771 = vmatprep.subr.mxu0 0.0
    %772 = vmatpush1.msra.mxu0 0.0
    %773 = vmatprep.subr.mxu0 0.0
    %774 = vmatpush1.msra.mxu0 0.0
    %775 = vmatprep.subr.mxu0 0.0
    %776 = vmatpush1.msra.mxu0 0.0
    %777 = vmatprep.subr.mxu0 0.0
    %778 = vmatpush1.msra.mxu0 0.0
    %779 = vmatprep.subr.mxu0 0.0
    %780 = vmatpush1.msra.mxu0 %v290
    %781 = vmatprep.subr.mxu0 0.0
    %782 = vmatpush1.msra.mxu0 %v289
    %783 = vmatprep.subr.mxu0 0.0
    %784 = vmatpush1.msra.mxu0 %v288
    %785 = vmatprep.subr.mxu0 0.0
    %786 = vmatpush1.msra.mxu0 %v287
    %787 = vmatprep.subr.mxu0 0.0
    %788 = vmatpush2.msra.mxu0 0.0
    %789 = vmatprep.subr.mxu0 0.0
    %790 = vmatpush2.msra.mxu0 0.0
    %791 = vmatprep.subr.mxu0 0.0
    %792 = vmatpush2.msra.mxu0 0.0
    %793 = vmatprep.subr.mxu0 0.0
    %794 = vmatpush2.msra.mxu0 0.0
    %795 = vmatprep.subr.mxu0 0.0
    %796 = vmatpush2.msra.mxu0 0.0
    %797 = vmatprep.subr.mxu0 0.0
    %798 = vmatpush2.msra.mxu0 0.0
    %799 = vmatprep.subr.mxu0 0.0
    %800 = vmatpush2.msra.mxu0 0.0
    %801 = vmatprep.subr.mxu0 0.0
    %802 = vmatpush2.msra.mxu0 0.0
    %803 = vmatprep.subr.mxu0 0.0
    %804 = vmatpush2.msra.mxu0 0.0
    %805 = vmatprep.subr.mxu0 0.0
    %806 = vmatpush2.msra.mxu0 0.0
    %807 = vmatprep.subr.mxu0 0.0
    %808 = vmatpush2.msra.mxu0 0.0
    %809 = vmatprep.subr.mxu0 0.0
    %810 = vmatpush2.msra.mxu0 0.0
    %811 = vmatprep.subr.mxu0 0.0
    %812 = vmatpush2.msra.mxu0 0.0
    %813 = vmatprep.subr.mxu0 0.0
    %814 = vmatpush2.msra.mxu0 0.0
    %815 = vmatprep.subr.mxu0 0.0
    %816 = vmatpush2.msra.mxu0 0.0
    %817 = vmatprep.subr.mxu0 0.0
    %818 = vmatpush2.msra.mxu0 0.0
    %819 = vmatprep.mubr.f32.mxu0 0.0
    %820 = vmatmul.mubr.f32.gmra.mxu0 %v753
    %v821 = vpop.f32.mrf.mxu0
    %v822 = vadd.f32 0.0, %v821
    %v823 = vpop.f32.mrf.mxu0
    %824 = vdwg.mxu0
    %825 = vmatprep.subr.mxu0 0.0
    %826 = vmatpush1.msra.mxu0 0.0
    %827 = vmatprep.subr.mxu0 0.0
    %828 = vmatpush1.msra.mxu0 0.0
    %829 = vmatprep.subr.mxu0 0.0
    %830 = vmatpush1.msra.mxu0 0.0
    %831 = vmatprep.subr.mxu0 0.0
    %832 = vmatpush1.msra.mxu0 0.0
    %833 = vmatprep.subr.mxu0 0.0
    %834 = vmatpush1.msra.mxu0 0.0
    %835 = vmatprep.subr.mxu0 0.0
    %836 = vmatpush1.msra.mxu0 0.0
    %837 = vmatprep.subr.mxu0 0.0
    %838 = vmatpush1.msra.mxu0 0.0
    %839 = vmatprep.subr.mxu0 0.0
    %840 = vmatpush1.msra.mxu0 0.0
    %841 = vmatprep.subr.mxu0 0.0
    %842 = vmatpush1.msra.mxu0 0.0
    %843 = vmatprep.subr.mxu0 0.0
    %844 = vmatpush1.msra.mxu0 0.0
    %845 = vmatprep.subr.mxu0 0.0
    %846 = vmatpush1.msra.mxu0 0.0
    %847 = vmatprep.subr.mxu0 0.0
    %848 = vmatpush1.msra.mxu0 0.0
    %849 = vmatprep.subr.mxu0 0.0
    %850 = vmatpush1.msra.mxu0 %v286
    %851 = vmatprep.subr.mxu0 0.0
    %852 = vmatpush1.msra.mxu0 %v285
    %853 = vmatprep.subr.mxu0 0.0
    %854 = vmatpush1.msra.mxu0 %v284
    %855 = vmatprep.subr.mxu0 0.0
    %856 = vmatpush1.msra.mxu0 %v283
    %857 = vmatprep.subr.mxu0 0.0
    %858 = vmatpush2.msra.mxu0 0.0
    %859 = vmatprep.subr.mxu0 0.0
    %860 = vmatpush2.msra.mxu0 0.0
    %861 = vmatprep.subr.mxu0 0.0
    %862 = vmatpush2.msra.mxu0 0.0
    %863 = vmatprep.subr.mxu0 0.0
    %864 = vmatpush2.msra.mxu0 0.0
    %865 = vmatprep.subr.mxu0 0.0
    %866 = vmatpush2.msra.mxu0 0.0
    %867 = vmatprep.subr.mxu0 0.0
    %868 = vmatpush2.msra.mxu0 0.0
    %869 = vmatprep.subr.mxu0 0.0
    %870 = vmatpush2.msra.mxu0 0.0
    %871 = vmatprep.subr.mxu0 0.0
    %872 = vmatpush2.msra.mxu0 0.0
    %873 = vmatprep.subr.mxu0 0.0
    %874 = vmatpush2.msra.mxu0 0.0
    %875 = vmatprep.subr.mxu0 0.0
    %876 = vmatpush2.msra.mxu0 0.0
    %877 = vmatprep.subr.mxu0 0.0
    %878 = vmatpush2.msra.mxu0 0.0
    %879 = vmatprep.subr.mxu0 0.0
    %880 = vmatpush2.msra.mxu0 0.0
    %881 = vmatprep.subr.mxu0 0.0
    %882 = vmatpush2.msra.mxu0 0.0
    %883 = vmatprep.subr.mxu0 0.0
    %884 = vmatpush2.msra.mxu0 0.0
    %885 = vmatprep.subr.mxu0 0.0
    %886 = vmatpush2.msra.mxu0 0.0
    %887 = vmatprep.subr.mxu0 0.0
    %888 = vmatpush2.msra.mxu0 0.0
    %889 = vmatprep.mubr.f32.mxu0 0.0
    %890 = vmatmul.mubr.f32.gmra.mxu0 %v656
    %v891 = vpop.f32.mrf.mxu0
    %v892 = vadd.f32 %v822, %v891
    %v893 = vpop.f32.mrf.mxu0
    %894 = vdwg.mxu0
    %v895 = vadd.f32 %v892, %v296
    %v896 = vmul.f32 %v895, %v277
    %v897 = vtanh.pop %v896
    %v898 = vmul.f32 %v277, %v897
    %v899 = vadd.f32 %v898, %v278
    %v900 = vmul.f32 %v899, %v646
    %902 = vrot.lane.b32.xlu0 %v899, 64
    %v903 = vpop.permute.xlu0 %902
    %v905 = vmul.f32 %v899, %v903
    %907 = vrot.lane.b32.xlu0 %v905, 32
    %v908 = vpop.permute.xlu0 %907
    %v910 = vadd.f32 %v900, %v908
    %v911 = vtanh.pop %v910
    %913 = vrot.lane.b32.xlu0 %v911, 64
    %v914 = vpop.permute.xlu0 %913
    %v916 = vmul.f32 %v899, %v914
    %918 = vrot.lane.b32.xlu0 %v749, 32
    %v919 = vpop.permute.xlu0 %918
    %v920 = vsel %vm298, %v919, 0
    %922 = vmatprep.subr.mxu0 0.0
    %923 = vmatpush1.msra.mxu0 0.0
    %924 = vmatprep.subr.mxu0 0.0
    %925 = vmatpush1.msra.mxu0 0.0
    %926 = vmatprep.subr.mxu0 0.0
    %927 = vmatpush1.msra.mxu0 0.0
    %928 = vmatprep.subr.mxu0 0.0
    %929 = vmatpush1.msra.mxu0 0.0
    %930 = vmatprep.subr.mxu0 0.0
    %931 = vmatpush1.msra.mxu0 0.0
    %932 = vmatprep.subr.mxu0 0.0
    %933 = vmatpush1.msra.mxu0 0.0
    %934 = vmatprep.subr.mxu0 0.0
    %935 = vmatpush1.msra.mxu0 0.0
    %936 = vmatprep.subr.mxu0 0.0
    %937 = vmatpush1.msra.mxu0 0.0
    %938 = vmatprep.subr.mxu0 0.0
    %939 = vmatpush1.msra.mxu0 0.0
    %940 = vmatprep.subr.mxu0 0.0
    %941 = vmatpush1.msra.mxu0 0.0
    %942 = vmatprep.subr.mxu0 0.0
    %943 = vmatpush1.msra.mxu0 0.0
    %944 = vmatprep.subr.mxu0 0.0
    %945 = vmatpush1.msra.mxu0 0.0
    %946 = vmatprep.subr.mxu0 0.0
    %947 = vmatpush1.msra.mxu0 %v282
    %948 = vmatprep.subr.mxu0 0.0
    %949 = vmatpush1.msra.mxu0 %v281
    %950 = vmatprep.subr.mxu0 0.0
    %951 = vmatpush1.msra.mxu0 %v280
    %952 = vmatprep.subr.mxu0 0.0
    %953 = vmatpush1.msra.mxu0 %v279
    %954 = vmatprep.subr.mxu0 0.0
    %955 = vmatpush2.msra.mxu0 0.0
    %956 = vmatprep.subr.mxu0 0.0
    %957 = vmatpush2.msra.mxu0 0.0
    %958 = vmatprep.subr.mxu0 0.0
    %959 = vmatpush2.msra.mxu0 0.0
    %960 = vmatprep.subr.mxu0 0.0
    %961 = vmatpush2.msra.mxu0 0.0
    %962 = vmatprep.subr.mxu0 0.0
    %963 = vmatpush2.msra.mxu0 0.0
    %964 = vmatprep.subr.mxu0 0.0
    %965 = vmatpush2.msra.mxu0 0.0
    %966 = vmatprep.subr.mxu0 0.0
    %967 = vmatpush2.msra.mxu0 0.0
    %968 = vmatprep.subr.mxu0 0.0
    %969 = vmatpush2.msra.mxu0 0.0
    %970 = vmatprep.subr.mxu0 0.0
    %971 = vmatpush2.msra.mxu0 0.0
    %972 = vmatprep.subr.mxu0 0.0
    %973 = vmatpush2.msra.mxu0 0.0
    %974 = vmatprep.subr.mxu0 0.0
    %975 = vmatpush2.msra.mxu0 0.0
    %976 = vmatprep.subr.mxu0 0.0
    %977 = vmatpush2.msra.mxu0 0.0
    %978 = vmatprep.subr.mxu0 0.0
    %979 = vmatpush2.msra.mxu0 0.0
    %980 = vmatprep.subr.mxu0 0.0
    %981 = vmatpush2.msra.mxu0 0.0
    %982 = vmatprep.subr.mxu0 0.0
    %983 = vmatpush2.msra.mxu0 0.0
    %984 = vmatprep.subr.mxu0 0.0
    %985 = vmatpush2.msra.mxu0 0.0
    %986 = vmatprep.mubr.f32.mxu0 0.0
    %987 = vmatmul.mubr.f32.gmra.mxu0 %v920
    %v988 = vpop.f32.mrf.mxu0
    %v989 = vadd.f32 0.0, %v988
    %v990 = vpop.f32.mrf.mxu0
    %991 = vdwg.mxu0
    %v992 = vadd.f32 %v251, %v989
    %v993 = vmul.f32 %v992, %v277
    %v994 = vtanh.pop %v993
    %v995 = vmul.f32 %v277, %v994
    %v996 = vadd.f32 %v995, %v278
    %v997 = vmul.f32 %v996, %v743
    %999 = vrot.lane.b32.xlu0 %v996, 64
    %v1000 = vpop.permute.xlu0 %999
    %v1002 = vmul.f32 %v996, %v1000
    %1004 = vrot.lane.b32.xlu0 %v1002, 32
    %v1005 = vpop.permute.xlu0 %1004
    %v1007 = vadd.f32 %v997, %v1005
    %v1008 = vtanh.pop %v1007
    %1010 = vrot.lane.b32.xlu0 %v1008, 64
    %v1011 = vpop.permute.xlu0 %1010
    %v1013 = vmul.f32 %v996, %v1011
    %1015 = vrot.lane.b32.xlu0 %v916, 32
    %v1016 = vpop.permute.xlu0 %1015
    %v1017 = vsel %vm298, %v1016, 0
    %1019 = vmatprep.subr.mxu0 0.0
    %1020 = vmatpush1.msra.mxu0 0.0
    %1021 = vmatprep.subr.mxu0 0.0
    %1022 = vmatpush1.msra.mxu0 0.0
    %1023 = vmatprep.subr.mxu0 0.0
    %1024 = vmatpush1.msra.mxu0 0.0
    %1025 = vmatprep.subr.mxu0 0.0
    %1026 = vmatpush1.msra.mxu0 0.0
    %1027 = vmatprep.subr.mxu0 0.0
    %1028 = vmatpush1.msra.mxu0 0.0
    %1029 = vmatprep.subr.mxu0 0.0
    %1030 = vmatpush1.msra.mxu0 0.0
    %1031 = vmatprep.subr.mxu0 0.0
    %1032 = vmatpush1.msra.mxu0 0.0
    %1033 = vmatprep.subr.mxu0 0.0
    %1034 = vmatpush1.msra.mxu0 0.0
    %1035 = vmatprep.subr.mxu0 0.0
    %1036 = vmatpush1.msra.mxu0 0.0
    %1037 = vmatprep.subr.mxu0 0.0
    %1038 = vmatpush1.msra.mxu0 0.0
    %1039 = vmatprep.subr.mxu0 0.0
    %1040 = vmatpush1.msra.mxu0 0.0
    %1041 = vmatprep.subr.mxu0 0.0
    %1042 = vmatpush1.msra.mxu0 0.0
    %1043 = vmatprep.subr.mxu0 0.0
    %1044 = vmatpush1.msra.mxu0 %v290
    %1045 = vmatprep.subr.mxu0 0.0
    %1046 = vmatpush1.msra.mxu0 %v289
    %1047 = vmatprep.subr.mxu0 0.0
    %1048 = vmatpush1.msra.mxu0 %v288
    %1049 = vmatprep.subr.mxu0 0.0
    %1050 = vmatpush1.msra.mxu0 %v287
    %1051 = vmatprep.subr.mxu0 0.0
    %1052 = vmatpush2.msra.mxu0 0.0
    %1053 = vmatprep.subr.mxu0 0.0
    %1054 = vmatpush2.msra.mxu0 0.0
    %1055 = vmatprep.subr.mxu0 0.0
    %1056 = vmatpush2.msra.mxu0 0.0
    %1057 = vmatprep.subr.mxu0 0.0
    %1058 = vmatpush2.msra.mxu0 0.0
    %1059 = vmatprep.subr.mxu0 0.0
    %1060 = vmatpush2.msra.mxu0 0.0
    %1061 = vmatprep.subr.mxu0 0.0
    %1062 = vmatpush2.msra.mxu0 0.0
    %1063 = vmatprep.subr.mxu0 0.0
    %1064 = vmatpush2.msra.mxu0 0.0
    %1065 = vmatprep.subr.mxu0 0.0
    %1066 = vmatpush2.msra.mxu0 0.0
    %1067 = vmatprep.subr.mxu0 0.0
    %1068 = vmatpush2.msra.mxu0 0.0
    %1069 = vmatprep.subr.mxu0 0.0
    %1070 = vmatpush2.msra.mxu0 0.0
    %1071 = vmatprep.subr.mxu0 0.0
    %1072 = vmatpush2.msra.mxu0 0.0
    %1073 = vmatprep.subr.mxu0 0.0
    %1074 = vmatpush2.msra.mxu0 0.0
    %1075 = vmatprep.subr.mxu0 0.0
    %1076 = vmatpush2.msra.mxu0 0.0
    %1077 = vmatprep.subr.mxu0 0.0
    %1078 = vmatpush2.msra.mxu0 0.0
    %1079 = vmatprep.subr.mxu0 0.0
    %1080 = vmatpush2.msra.mxu0 0.0
    %1081 = vmatprep.subr.mxu0 0.0
    %1082 = vmatpush2.msra.mxu0 0.0
    %1083 = vmatprep.mubr.f32.mxu0 0.0
    %1084 = vmatmul.mubr.f32.gmra.mxu0 %v1017
    %v1085 = vpop.f32.mrf.mxu0
    %v1086 = vadd.f32 0.0, %v1085
    %v1087 = vpop.f32.mrf.mxu0
    %1088 = vdwg.mxu0
    %1089 = vmatprep.subr.mxu0 0.0
    %1090 = vmatpush1.msra.mxu0 0.0
    %1091 = vmatprep.subr.mxu0 0.0
    %1092 = vmatpush1.msra.mxu0 0.0
    %1093 = vmatprep.subr.mxu0 0.0
    %1094 = vmatpush1.msra.mxu0 0.0
    %1095 = vmatprep.subr.mxu0 0.0
    %1096 = vmatpush1.msra.mxu0 0.0
    %1097 = vmatprep.subr.mxu0 0.0
    %1098 = vmatpush1.msra.mxu0 0.0
    %1099 = vmatprep.subr.mxu0 0.0
    %1100 = vmatpush1.msra.mxu0 0.0
    %1101 = vmatprep.subr.mxu0 0.0
    %1102 = vmatpush1.msra.mxu0 0.0
    %1103 = vmatprep.subr.mxu0 0.0
    %1104 = vmatpush1.msra.mxu0 0.0
    %1105 = vmatprep.subr.mxu0 0.0
    %1106 = vmatpush1.msra.mxu0 0.0
    %1107 = vmatprep.subr.mxu0 0.0
    %1108 = vmatpush1.msra.mxu0 0.0
    %1109 = vmatprep.subr.mxu0 0.0
    %1110 = vmatpush1.msra.mxu0 0.0
    %1111 = vmatprep.subr.mxu0 0.0
    %1112 = vmatpush1.msra.mxu0 0.0
    %1113 = vmatprep.subr.mxu0 0.0
    %1114 = vmatpush1.msra.mxu0 %v286
    %1115 = vmatprep.subr.mxu0 0.0
    %1116 = vmatpush1.msra.mxu0 %v285
    %1117 = vmatprep.subr.mxu0 0.0
    %1118 = vmatpush1.msra.mxu0 %v284
    %1119 = vmatprep.subr.mxu0 0.0
    %1120 = vmatpush1.msra.mxu0 %v283
    %1121 = vmatprep.subr.mxu0 0.0
    %1122 = vmatpush2.msra.mxu0 0.0
    %1123 = vmatprep.subr.mxu0 0.0
    %1124 = vmatpush2.msra.mxu0 0.0
    %1125 = vmatprep.subr.mxu0 0.0
    %1126 = vmatpush2.msra.mxu0 0.0
    %1127 = vmatprep.subr.mxu0 0.0
    %1128 = vmatpush2.msra.mxu0 0.0
    %1129 = vmatprep.subr.mxu0 0.0
    %1130 = vmatpush2.msra.mxu0 0.0
    %1131 = vmatprep.subr.mxu0 0.0
    %1132 = vmatpush2.msra.mxu0 0.0
    %1133 = vmatprep.subr.mxu0 0.0
    %1134 = vmatpush2.msra.mxu0 0.0
    %1135 = vmatprep.subr.mxu0 0.0
    %1136 = vmatpush2.msra.mxu0 0.0
    %1137 = vmatprep.subr.mxu0 0.0
    %1138 = vmatpush2.msra.mxu0 0.0
    %1139 = vmatprep.subr.mxu0 0.0
    %1140 = vmatpush2.msra.mxu0 0.0
    %1141 = vmatprep.subr.mxu0 0.0
    %1142 = vmatpush2.msra.mxu0 0.0
    %1143 = vmatprep.subr.mxu0 0.0
    %1144 = vmatpush2.msra.mxu0 0.0
    %1145 = vmatprep.subr.mxu0 0.0
    %1146 = vmatpush2.msra.mxu0 0.0
    %1147 = vmatprep.subr.mxu0 0.0
    %1148 = vmatpush2.msra.mxu0 0.0
    %1149 = vmatprep.subr.mxu0 0.0
    %1150 = vmatpush2.msra.mxu0 0.0
    %1151 = vmatprep.subr.mxu0 0.0
    %1152 = vmatpush2.msra.mxu0 0.0
    %1153 = vmatprep.mubr.f32.mxu0 0.0
    %1154 = vmatmul.mubr.f32.gmra.mxu0 %v920
    %v1155 = vpop.f32.mrf.mxu0
    %v1156 = vadd.f32 %v1086, %v1155
    %v1157 = vpop.f32.mrf.mxu0
    %1158 = vdwg.mxu0
    %v1159 = vadd.f32 %v1156, %v296
    %v1160 = vmul.f32 %v1159, %v277
    %v1161 = vtanh.pop %v1160
    %v1162 = vmul.f32 %v277, %v1161
    %v1163 = vadd.f32 %v1162, %v278
    %v1164 = vmul.f32 %v1163, %v910
    %1166 = vrot.lane.b32.xlu0 %v1163, 64
    %v1167 = vpop.permute.xlu0 %1166
    %v1169 = vmul.f32 %v1163, %v1167
    %1171 = vrot.lane.b32.xlu0 %v1169, 32
    %v1172 = vpop.permute.xlu0 %1171
    %v1174 = vadd.f32 %v1164, %v1172
    %v1175 = vtanh.pop %v1174
    %1177 = vrot.lane.b32.xlu0 %v1175, 64
    %v1178 = vpop.permute.xlu0 %1177
    %v1180 = vmul.f32 %v1163, %v1178
    %1182 = vrot.lane.b32.xlu0 %v1013, 32
    %v1183 = vpop.permute.xlu0 %1182
    %v1184 = vsel %vm298, %v1183, 0
    %1186 = vmatprep.subr.mxu0 0.0
    %1187 = vmatpush1.msra.mxu0 0.0
    %1188 = vmatprep.subr.mxu0 0.0
    %1189 = vmatpush1.msra.mxu0 0.0
    %1190 = vmatprep.subr.mxu0 0.0
    %1191 = vmatpush1.msra.mxu0 0.0
    %1192 = vmatprep.subr.mxu0 0.0
    %1193 = vmatpush1.msra.mxu0 0.0
    %1194 = vmatprep.subr.mxu0 0.0
    %1195 = vmatpush1.msra.mxu0 0.0
    %1196 = vmatprep.subr.mxu0 0.0
    %1197 = vmatpush1.msra.mxu0 0.0
    %1198 = vmatprep.subr.mxu0 0.0
    %1199 = vmatpush1.msra.mxu0 0.0
    %1200 = vmatprep.subr.mxu0 0.0
    %1201 = vmatpush1.msra.mxu0 0.0
    %1202 = vmatprep.subr.mxu0 0.0
    %1203 = vmatpush1.msra.mxu0 0.0
    %1204 = vmatprep.subr.mxu0 0.0
    %1205 = vmatpush1.msra.mxu0 0.0
    %1206 = vmatprep.subr.mxu0 0.0
    %1207 = vmatpush1.msra.mxu0 0.0
    %1208 = vmatprep.subr.mxu0 0.0
    %1209 = vmatpush1.msra.mxu0 0.0
    %1210 = vmatprep.subr.mxu0 0.0
    %1211 = vmatpush1.msra.mxu0 %v282
    %1212 = vmatprep.subr.mxu0 0.0
    %1213 = vmatpush1.msra.mxu0 %v281
    %1214 = vmatprep.subr.mxu0 0.0
    %1215 = vmatpush1.msra.mxu0 %v280
    %1216 = vmatprep.subr.mxu0 0.0
    %1217 = vmatpush1.msra.mxu0 %v279
    %1218 = vmatprep.subr.mxu0 0.0
    %1219 = vmatpush2.msra.mxu0 0.0
    %1220 = vmatprep.subr.mxu0 0.0
    %1221 = vmatpush2.msra.mxu0 0.0
    %1222 = vmatprep.subr.mxu0 0.0
    %1223 = vmatpush2.msra.mxu0 0.0
    %1224 = vmatprep.subr.mxu0 0.0
    %1225 = vmatpush2.msra.mxu0 0.0
    %1226 = vmatprep.subr.mxu0 0.0
    %1227 = vmatpush2.msra.mxu0 0.0
    %1228 = vmatprep.subr.mxu0 0.0
    %1229 = vmatpush2.msra.mxu0 0.0
    %1230 = vmatprep.subr.mxu0 0.0
    %1231 = vmatpush2.msra.mxu0 0.0
    %1232 = vmatprep.subr.mxu0 0.0
    %1233 = vmatpush2.msra.mxu0 0.0
    %1234 = vmatprep.subr.mxu0 0.0
    %1235 = vmatpush2.msra.mxu0 0.0
    %1236 = vmatprep.subr.mxu0 0.0
    %1237 = vmatpush2.msra.mxu0 0.0
    %1238 = vmatprep.subr.mxu0 0.0
    %1239 = vmatpush2.msra.mxu0 0.0
    %1240 = vmatprep.subr.mxu0 0.0
    %1241 = vmatpush2.msra.mxu0 0.0
    %1242 = vmatprep.subr.mxu0 0.0
    %1243 = vmatpush2.msra.mxu0 0.0
    %1244 = vmatprep.subr.mxu0 0.0
    %1245 = vmatpush2.msra.mxu0 0.0
    %1246 = vmatprep.subr.mxu0 0.0
    %1247 = vmatpush2.msra.mxu0 0.0
    %1248 = vmatprep.subr.mxu0 0.0
    %1249 = vmatpush2.msra.mxu0 0.0
    %1250 = vmatprep.mubr.f32.mxu0 0.0
    %1251 = vmatmul.mubr.f32.gmra.mxu0 %v1184
    %v1252 = vpop.f32.mrf.mxu0
    %v1253 = vadd.f32 0.0, %v1252
    %v1254 = vpop.f32.mrf.mxu0
    %1255 = vdwg.mxu0
    %v1256 = vadd.f32 %v256, %v1253
    %v1257 = vmul.f32 %v1256, %v277
    %v1258 = vtanh.pop %v1257
    %v1259 = vmul.f32 %v277, %v1258
    %v1260 = vadd.f32 %v1259, %v278
    %v1261 = vmul.f32 %v1260, %v1007
    %1263 = vrot.lane.b32.xlu0 %v1260, 64
    %v1264 = vpop.permute.xlu0 %1263
    %v1266 = vmul.f32 %v1260, %v1264
    %1268 = vrot.lane.b32.xlu0 %v1266, 32
    %v1269 = vpop.permute.xlu0 %1268
    %v1271 = vadd.f32 %v1261, %v1269
    %v1272 = vtanh.pop %v1271
    %1274 = vrot.lane.b32.xlu0 %v1272, 64
    %v1275 = vpop.permute.xlu0 %1274
    %v1277 = vmul.f32 %v1260, %v1275
    %1279 = vrot.lane.b32.xlu0 %v1180, 32
    %v1280 = vpop.permute.xlu0 %1279
    %v1281 = vsel %vm298, %v1280, 0
    %1283 = vmatprep.subr.mxu0 0.0
    %1284 = vmatpush1.msra.mxu0 0.0
    %1285 = vmatprep.subr.mxu0 0.0
    %1286 = vmatpush1.msra.mxu0 0.0
    %1287 = vmatprep.subr.mxu0 0.0
    %1288 = vmatpush1.msra.mxu0 0.0
    %1289 = vmatprep.subr.mxu0 0.0
    %1290 = vmatpush1.msra.mxu0 0.0
    %1291 = vmatprep.subr.mxu0 0.0
    %1292 = vmatpush1.msra.mxu0 0.0
    %1293 = vmatprep.subr.mxu0 0.0
    %1294 = vmatpush1.msra.mxu0 0.0
    %1295 = vmatprep.subr.mxu0 0.0
    %1296 = vmatpush1.msra.mxu0 0.0
    %1297 = vmatprep.subr.mxu0 0.0
    %1298 = vmatpush1.msra.mxu0 0.0
    %1299 = vmatprep.subr.mxu0 0.0
    %1300 = vmatpush1.msra.mxu0 0.0
    %1301 = vmatprep.subr.mxu0 0.0
    %1302 = vmatpush1.msra.mxu0 0.0
    %1303 = vmatprep.subr.mxu0 0.0
    %1304 = vmatpush1.msra.mxu0 0.0
    %1305 = vmatprep.subr.mxu0 0.0
    %1306 = vmatpush1.msra.mxu0 0.0
    %1307 = vmatprep.subr.mxu0 0.0
    %1308 = vmatpush1.msra.mxu0 %v290
    %1309 = vmatprep.subr.mxu0 0.0
    %1310 = vmatpush1.msra.mxu0 %v289
    %1311 = vmatprep.subr.mxu0 0.0
    %1312 = vmatpush1.msra.mxu0 %v288
    %1313 = vmatprep.subr.mxu0 0.0
    %1314 = vmatpush1.msra.mxu0 %v287
    %1315 = vmatprep.subr.mxu0 0.0
    %1316 = vmatpush2.msra.mxu0 0.0
    %1317 = vmatprep.subr.mxu0 0.0
    %1318 = vmatpush2.msra.mxu0 0.0
    %1319 = vmatprep.subr.mxu0 0.0
    %1320 = vmatpush2.msra.mxu0 0.0
    %1321 = vmatprep.subr.mxu0 0.0
    %1322 = vmatpush2.msra.mxu0 0.0
    %1323 = vmatprep.subr.mxu0 0.0
    %1324 = vmatpush2.msra.mxu0 0.0
    %1325 = vmatprep.subr.mxu0 0.0
    %1326 = vmatpush2.msra.mxu0 0.0
    %1327 = vmatprep.subr.mxu0 0.0
    %1328 = vmatpush2.msra.mxu0 0.0
    %1329 = vmatprep.subr.mxu0 0.0
    %1330 = vmatpush2.msra.mxu0 0.0
    %1331 = vmatprep.subr.mxu0 0.0
    %1332 = vmatpush2.msra.mxu0 0.0
    %1333 = vmatprep.subr.mxu0 0.0
    %1334 = vmatpush2.msra.mxu0 0.0
    %1335 = vmatprep.subr.mxu0 0.0
    %1336 = vmatpush2.msra.mxu0 0.0
    %1337 = vmatprep.subr.mxu0 0.0
    %1338 = vmatpush2.msra.mxu0 0.0
    %1339 = vmatprep.subr.mxu0 0.0
    %1340 = vmatpush2.msra.mxu0 0.0
    %1341 = vmatprep.subr.mxu0 0.0
    %1342 = vmatpush2.msra.mxu0 0.0
    %1343 = vmatprep.subr.mxu0 0.0
    %1344 = vmatpush2.msra.mxu0 0.0
    %1345 = vmatprep.subr.mxu0 0.0
    %1346 = vmatpush2.msra.mxu0 0.0
    %1347 = vmatprep.mubr.f32.mxu0 0.0
    %1348 = vmatmul.mubr.f32.gmra.mxu0 %v1281
    %v1349 = vpop.f32.mrf.mxu0
    %v1350 = vadd.f32 0.0, %v1349
    %v1351 = vpop.f32.mrf.mxu0
    %1352 = vdwg.mxu0
    %1353 = vmatprep.subr.mxu0 0.0
    %1354 = vmatpush1.msra.mxu0 0.0
    %1355 = vmatprep.subr.mxu0 0.0
    %1356 = vmatpush1.msra.mxu0 0.0
    %1357 = vmatprep.subr.mxu0 0.0
    %1358 = vmatpush1.msra.mxu0 0.0
    %1359 = vmatprep.subr.mxu0 0.0
    %1360 = vmatpush1.msra.mxu0 0.0
    %1361 = vmatprep.subr.mxu0 0.0
    %1362 = vmatpush1.msra.mxu0 0.0
    %1363 = vmatprep.subr.mxu0 0.0
    %1364 = vmatpush1.msra.mxu0 0.0
    %1365 = vmatprep.subr.mxu0 0.0
    %1366 = vmatpush1.msra.mxu0 0.0
    %1367 = vmatprep.subr.mxu0 0.0
    %1368 = vmatpush1.msra.mxu0 0.0
    %1369 = vmatprep.subr.mxu0 0.0
    %1370 = vmatpush1.msra.mxu0 0.0
    %1371 = vmatprep.subr.mxu0 0.0
    %1372 = vmatpush1.msra.mxu0 0.0
    %1373 = vmatprep.subr.mxu0 0.0
    %1374 = vmatpush1.msra.mxu0 0.0
    %1375 = vmatprep.subr.mxu0 0.0
    %1376 = vmatpush1.msra.mxu0 0.0
    %1377 = vmatprep.subr.mxu0 0.0
    %1378 = vmatpush1.msra.mxu0 %v286
    %1379 = vmatprep.subr.mxu0 0.0
    %1380 = vmatpush1.msra.mxu0 %v285
    %1381 = vmatprep.subr.mxu0 0.0
    %1382 = vmatpush1.msra.mxu0 %v284
    %1383 = vmatprep.subr.mxu0 0.0
    %1384 = vmatpush1.msra.mxu0 %v283
    %1385 = vmatprep.subr.mxu0 0.0
    %1386 = vmatpush2.msra.mxu0 0.0
    %1387 = vmatprep.subr.mxu0 0.0
    %1388 = vmatpush2.msra.mxu0 0.0
    %1389 = vmatprep.subr.mxu0 0.0
    %1390 = vmatpush2.msra.mxu0 0.0
    %1391 = vmatprep.subr.mxu0 0.0
    %1392 = vmatpush2.msra.mxu0 0.0
    %1393 = vmatprep.subr.mxu0 0.0
    %1394 = vmatpush2.msra.mxu0 0.0
    %1395 = vmatprep.subr.mxu0 0.0
    %1396 = vmatpush2.msra.mxu0 0.0
    %1397 = vmatprep.subr.mxu0 0.0
    %1398 = vmatpush2.msra.mxu0 0.0
    %1399 = vmatprep.subr.mxu0 0.0
    %1400 = vmatpush2.msra.mxu0 0.0
    %1401 = vmatprep.subr.mxu0 0.0
    %1402 = vmatpush2.msra.mxu0 0.0
    %1403 = vmatprep.subr.mxu0 0.0
    %1404 = vmatpush2.msra.mxu0 0.0
    %1405 = vmatprep.subr.mxu0 0.0
    %1406 = vmatpush2.msra.mxu0 0.0
    %1407 = vmatprep.subr.mxu0 0.0
    %1408 = vmatpush2.msra.mxu0 0.0
    %1409 = vmatprep.subr.mxu0 0.0
    %1410 = vmatpush2.msra.mxu0 0.0
    %1411 = vmatprep.subr.mxu0 0.0
    %1412 = vmatpush2.msra.mxu0 0.0
    %1413 = vmatprep.subr.mxu0 0.0
    %1414 = vmatpush2.msra.mxu0 0.0
    %1415 = vmatprep.subr.mxu0 0.0
    %1416 = vmatpush2.msra.mxu0 0.0
    %1417 = vmatprep.mubr.f32.mxu0 0.0
    %1418 = vmatmul.mubr.f32.gmra.mxu0 %v1184
    %v1419 = vpop.f32.mrf.mxu0
    %v1420 = vadd.f32 %v1350, %v1419
    %v1421 = vpop.f32.mrf.mxu0
    %1422 = vdwg.mxu0
    %v1423 = vadd.f32 %v1420, %v296
    %v1424 = vmul.f32 %v1423, %v277
    %v1425 = vtanh.pop %v1424
    %v1426 = vmul.f32 %v277, %v1425
    %v1427 = vadd.f32 %v1426, %v278
    %v1428 = vmul.f32 %v1427, %v1174
    %1430 = vrot.lane.b32.xlu0 %v1427, 64
    %v1431 = vpop.permute.xlu0 %1430
    %v1433 = vmul.f32 %v1427, %v1431
    %1435 = vrot.lane.b32.xlu0 %v1433, 32
    %v1436 = vpop.permute.xlu0 %1435
    %v1438 = vadd.f32 %v1428, %v1436
    %v1439 = vtanh.pop %v1438
    %1441 = vrot.lane.b32.xlu0 %v1439, 64
    %v1442 = vpop.permute.xlu0 %1441
    %v1444 = vmul.f32 %v1427, %v1442
    %1446 = vrot.lane.b32.xlu0 %v1277, 32
    %v1447 = vpop.permute.xlu0 %1446
    %v1448 = vsel %vm298, %v1447, 0
    %1450 = vmatprep.subr.mxu0 0.0
    %1451 = vmatpush1.msra.mxu0 0.0
    %1452 = vmatprep.subr.mxu0 0.0
    %1453 = vmatpush1.msra.mxu0 0.0
    %1454 = vmatprep.subr.mxu0 0.0
    %1455 = vmatpush1.msra.mxu0 0.0
    %1456 = vmatprep.subr.mxu0 0.0
    %1457 = vmatpush1.msra.mxu0 0.0
    %1458 = vmatprep.subr.mxu0 0.0
    %1459 = vmatpush1.msra.mxu0 0.0
    %1460 = vmatprep.subr.mxu0 0.0
    %1461 = vmatpush1.msra.mxu0 0.0
    %1462 = vmatprep.subr.mxu0 0.0
    %1463 = vmatpush1.msra.mxu0 0.0
    %1464 = vmatprep.subr.mxu0 0.0
    %1465 = vmatpush1.msra.mxu0 0.0
    %1466 = vmatprep.subr.mxu0 0.0
    %1467 = vmatpush1.msra.mxu0 0.0
    %1468 = vmatprep.subr.mxu0 0.0
    %1469 = vmatpush1.msra.mxu0 0.0
    %1470 = vmatprep.subr.mxu0 0.0
    %1471 = vmatpush1.msra.mxu0 0.0
    %1472 = vmatprep.subr.mxu0 0.0
    %1473 = vmatpush1.msra.mxu0 0.0
    %1474 = vmatprep.subr.mxu0 0.0
    %1475 = vmatpush1.msra.mxu0 %v282
    %1476 = vmatprep.subr.mxu0 0.0
    %1477 = vmatpush1.msra.mxu0 %v281
    %1478 = vmatprep.subr.mxu0 0.0
    %1479 = vmatpush1.msra.mxu0 %v280
    %1480 = vmatprep.subr.mxu0 0.0
    %1481 = vmatpush1.msra.mxu0 %v279
    %1482 = vmatprep.subr.mxu0 0.0
    %1483 = vmatpush2.msra.mxu0 0.0
    %1484 = vmatprep.subr.mxu0 0.0
    %1485 = vmatpush2.msra.mxu0 0.0
    %1486 = vmatprep.subr.mxu0 0.0
    %1487 = vmatpush2.msra.mxu0 0.0
    %1488 = vmatprep.subr.mxu0 0.0
    %1489 = vmatpush2.msra.mxu0 0.0
    %1490 = vmatprep.subr.mxu0 0.0
    %1491 = vmatpush2.msra.mxu0 0.0
    %1492 = vmatprep.subr.mxu0 0.0
    %1493 = vmatpush2.msra.mxu0 0.0
    %1494 = vmatprep.subr.mxu0 0.0
    %1495 = vmatpush2.msra.mxu0 0.0
    %1496 = vmatprep.subr.mxu0 0.0
    %1497 = vmatpush2.msra.mxu0 0.0
    %1498 = vmatprep.subr.mxu0 0.0
    %1499 = vmatpush2.msra.mxu0 0.0
    %1500 = vmatprep.subr.mxu0 0.0
    %1501 = vmatpush2.msra.mxu0 0.0
    %1502 = vmatprep.subr.mxu0 0.0
    %1503 = vmatpush2.msra.mxu0 0.0
    %1504 = vmatprep.subr.mxu0 0.0
    %1505 = vmatpush2.msra.mxu0 0.0
    %1506 = vmatprep.subr.mxu0 0.0
    %1507 = vmatpush2.msra.mxu0 0.0
    %1508 = vmatprep.subr.mxu0 0.0
    %1509 = vmatpush2.msra.mxu0 0.0
    %1510 = vmatprep.subr.mxu0 0.0
    %1511 = vmatpush2.msra.mxu0 0.0
    %1512 = vmatprep.subr.mxu0 0.0
    %1513 = vmatpush2.msra.mxu0 0.0
    %1514 = vmatprep.mubr.f32.mxu0 0.0
    %1515 = vmatmul.mubr.f32.gmra.mxu0 %v1448
    %v1516 = vpop.f32.mrf.mxu0
    %v1517 = vadd.f32 0.0, %v1516
    %v1518 = vpop.f32.mrf.mxu0
    %1519 = vdwg.mxu0
    %v1520 = vadd.f32 %v261, %v1517
    %v1521 = vmul.f32 %v1520, %v277
    %v1522 = vtanh.pop %v1521
    %v1523 = vmul.f32 %v277, %v1522
    %v1524 = vadd.f32 %v1523, %v278
    %v1525 = vmul.f32 %v1524, %v1271
    %1527 = vrot.lane.b32.xlu0 %v1524, 64
    %v1528 = vpop.permute.xlu0 %1527
    %v1530 = vmul.f32 %v1524, %v1528
    %1532 = vrot.lane.b32.xlu0 %v1530, 32
    %v1533 = vpop.permute.xlu0 %1532
    %v1535 = vadd.f32 %v1525, %v1533
    %v1536 = vtanh.pop %v1535
    %1538 = vrot.lane.b32.xlu0 %v1536, 64
    %v1539 = vpop.permute.xlu0 %1538
    %v1541 = vmul.f32 %v1524, %v1539
    %1543 = vrot.lane.b32.xlu0 %v1444, 32
    %v1544 = vpop.permute.xlu0 %1543
    %v1545 = vsel %vm298, %v1544, 0
    %1547 = vmatprep.subr.mxu0 0.0
    %1548 = vmatpush1.msra.mxu0 0.0
    %1549 = vmatprep.subr.mxu0 0.0
    %1550 = vmatpush1.msra.mxu0 0.0
    %1551 = vmatprep.subr.mxu0 0.0
    %1552 = vmatpush1.msra.mxu0 0.0
    %1553 = vmatprep.subr.mxu0 0.0
    %1554 = vmatpush1.msra.mxu0 0.0
    %1555 = vmatprep.subr.mxu0 0.0
    %1556 = vmatpush1.msra.mxu0 0.0
    %1557 = vmatprep.subr.mxu0 0.0
    %1558 = vmatpush1.msra.mxu0 0.0
    %1559 = vmatprep.subr.mxu0 0.0
    %1560 = vmatpush1.msra.mxu0 0.0
    %1561 = vmatprep.subr.mxu0 0.0
    %1562 = vmatpush1.msra.mxu0 0.0
    %1563 = vmatprep.subr.mxu0 0.0
    %1564 = vmatpush1.msra.mxu0 0.0
    %1565 = vmatprep.subr.mxu0 0.0
    %1566 = vmatpush1.msra.mxu0 0.0
    %1567 = vmatprep.subr.mxu0 0.0
    %1568 = vmatpush1.msra.mxu0 0.0
    %1569 = vmatprep.subr.mxu0 0.0
    %1570 = vmatpush1.msra.mxu0 0.0
    %1571 = vmatprep.subr.mxu0 0.0
    %1572 = vmatpush1.msra.mxu0 %v290
    %1573 = vmatprep.subr.mxu0 0.0
    %1574 = vmatpush1.msra.mxu0 %v289
    %1575 = vmatprep.subr.mxu0 0.0
    %1576 = vmatpush1.msra.mxu0 %v288
    %1577 = vmatprep.subr.mxu0 0.0
    %1578 = vmatpush1.msra.mxu0 %v287
    %1579 = vmatprep.subr.mxu0 0.0
    %1580 = vmatpush2.msra.mxu0 0.0
    %1581 = vmatprep.subr.mxu0 0.0
    %1582 = vmatpush2.msra.mxu0 0.0
    %1583 = vmatprep.subr.mxu0 0.0
    %1584 = vmatpush2.msra.mxu0 0.0
    %1585 = vmatprep.subr.mxu0 0.0
    %1586 = vmatpush2.msra.mxu0 0.0
    %1587 = vmatprep.subr.mxu0 0.0
    %1588 = vmatpush2.msra.mxu0 0.0
    %1589 = vmatprep.subr.mxu0 0.0
    %1590 = vmatpush2.msra.mxu0 0.0
    %1591 = vmatprep.subr.mxu0 0.0
    %1592 = vmatpush2.msra.mxu0 0.0
    %1593 = vmatprep.subr.mxu0 0.0
    %1594 = vmatpush2.msra.mxu0 0.0
    %1595 = vmatprep.subr.mxu0 0.0
    %1596 = vmatpush2.msra.mxu0 0.0
    %1597 = vmatprep.subr.mxu0 0.0
    %1598 = vmatpush2.msra.mxu0 0.0
    %1599 = vmatprep.subr.mxu0 0.0
    %1600 = vmatpush2.msra.mxu0 0.0
    %1601 = vmatprep.subr.mxu0 0.0
    %1602 = vmatpush2.msra.mxu0 0.0
    %1603 = vmatprep.subr.mxu0 0.0
    %1604 = vmatpush2.msra.mxu0 0.0
    %1605 = vmatprep.subr.mxu0 0.0
    %1606 = vmatpush2.msra.mxu0 0.0
    %1607 = vmatprep.subr.mxu0 0.0
    %1608 = vmatpush2.msra.mxu0 0.0
    %1609 = vmatprep.subr.mxu0 0.0
    %1610 = vmatpush2.msra.mxu0 0.0
    %1611 = vmatprep.mubr.f32.mxu0 0.0
    %1612 = vmatmul.mubr.f32.gmra.mxu0 %v1545
    %v1613 = vpop.f32.mrf.mxu0
    %v1614 = vadd.f32 0.0, %v1613
    %v1615 = vpop.f32.mrf.mxu0
    %1616 = vdwg.mxu0
    %1617 = vmatprep.subr.mxu0 0.0
    %1618 = vmatpush1.msra.mxu0 0.0
    %1619 = vmatprep.subr.mxu0 0.0
    %1620 = vmatpush1.msra.mxu0 0.0
    %1621 = vmatprep.subr.mxu0 0.0
    %1622 = vmatpush1.msra.mxu0 0.0
    %1623 = vmatprep.subr.mxu0 0.0
    %1624 = vmatpush1.msra.mxu0 0.0
    %1625 = vmatprep.subr.mxu0 0.0
    %1626 = vmatpush1.msra.mxu0 0.0
    %1627 = vmatprep.subr.mxu0 0.0
    %1628 = vmatpush1.msra.mxu0 0.0
    %1629 = vmatprep.subr.mxu0 0.0
    %1630 = vmatpush1.msra.mxu0 0.0
    %1631 = vmatprep.subr.mxu0 0.0
    %1632 = vmatpush1.msra.mxu0 0.0
    %1633 = vmatprep.subr.mxu0 0.0
    %1634 = vmatpush1.msra.mxu0 0.0
    %1635 = vmatprep.subr.mxu0 0.0
    %1636 = vmatpush1.msra.mxu0 0.0
    %1637 = vmatprep.subr.mxu0 0.0
    %1638 = vmatpush1.msra.mxu0 0.0
    %1639 = vmatprep.subr.mxu0 0.0
    %1640 = vmatpush1.msra.mxu0 0.0
    %1641 = vmatprep.subr.mxu0 0.0
    %1642 = vmatpush1.msra.mxu0 %v286
    %1643 = vmatprep.subr.mxu0 0.0
    %1644 = vmatpush1.msra.mxu0 %v285
    %1645 = vmatprep.subr.mxu0 0.0
    %1646 = vmatpush1.msra.mxu0 %v284
    %1647 = vmatprep.subr.mxu0 0.0
    %1648 = vmatpush1.msra.mxu0 %v283
    %1649 = vmatprep.subr.mxu0 0.0
    %1650 = vmatpush2.msra.mxu0 0.0
    %1651 = vmatprep.subr.mxu0 0.0
    %1652 = vmatpush2.msra.mxu0 0.0
    %1653 = vmatprep.subr.mxu0 0.0
    %1654 = vmatpush2.msra.mxu0 0.0
    %1655 = vmatprep.subr.mxu0 0.0
    %1656 = vmatpush2.msra.mxu0 0.0
    %1657 = vmatprep.subr.mxu0 0.0
    %1658 = vmatpush2.msra.mxu0 0.0
    %1659 = vmatprep.subr.mxu0 0.0
    %1660 = vmatpush2.msra.mxu0 0.0
    %1661 = vmatprep.subr.mxu0 0.0
    %1662 = vmatpush2.msra.mxu0 0.0
    %1663 = vmatprep.subr.mxu0 0.0
    %1664 = vmatpush2.msra.mxu0 0.0
    %1665 = vmatprep.subr.mxu0 0.0
    %1666 = vmatpush2.msra.mxu0 0.0
    %1667 = vmatprep.subr.mxu0 0.0
    %1668 = vmatpush2.msra.mxu0 0.0
    %1669 = vmatprep.subr.mxu0 0.0
    %1670 = vmatpush2.msra.mxu0 0.0
    %1671 = vmatprep.subr.mxu0 0.0
    %1672 = vmatpush2.msra.mxu0 0.0
    %1673 = vmatprep.subr.mxu0 0.0
    %1674 = vmatpush2.msra.mxu0 0.0
    %1675 = vmatprep.subr.mxu0 0.0
    %1676 = vmatpush2.msra.mxu0 0.0
    %1677 = vmatprep.subr.mxu0 0.0
    %1678 = vmatpush2.msra.mxu0 0.0
    %1679 = vmatprep.subr.mxu0 0.0
    %1680 = vmatpush2.msra.mxu0 0.0
    %1681 = vmatprep.mubr.f32.mxu0 0.0
    %1682 = vmatmul.mubr.f32.gmra.mxu0 %v1448
    %v1683 = vpop.f32.mrf.mxu0
    %v1684 = vadd.f32 %v1614, %v1683
    %v1685 = vpop.f32.mrf.mxu0
    %1686 = vdwg.mxu0
    %v1687 = vadd.f32 %v1684, %v296
    %v1688 = vmul.f32 %v1687, %v277
    %v1689 = vtanh.pop %v1688
    %v1690 = vmul.f32 %v277, %v1689
    %v1691 = vadd.f32 %v1690, %v278
    %v1692 = vmul.f32 %v1691, %v1438
    %1694 = vrot.lane.b32.xlu0 %v1691, 64
    %v1695 = vpop.permute.xlu0 %1694
    %v1697 = vmul.f32 %v1691, %v1695
    %1699 = vrot.lane.b32.xlu0 %v1697, 32
    %v1700 = vpop.permute.xlu0 %1699
    %v1702 = vadd.f32 %v1692, %v1700
    %v1703 = vtanh.pop %v1702
    %1705 = vrot.lane.b32.xlu0 %v1703, 64
    %v1706 = vpop.permute.xlu0 %1705
    %v1708 = vmul.f32 %v1691, %v1706
    %1710 = vrot.lane.b32.xlu0 %v1541, 32
    %v1711 = vpop.permute.xlu0 %1710
    %v1712 = vsel %vm298, %v1711, 0
    %1714 = vmatprep.subr.mxu0 0.0
    %1715 = vmatpush1.msra.mxu0 0.0
    %1716 = vmatprep.subr.mxu0 0.0
    %1717 = vmatpush1.msra.mxu0 0.0
    %1718 = vmatprep.subr.mxu0 0.0
    %1719 = vmatpush1.msra.mxu0 0.0
    %1720 = vmatprep.subr.mxu0 0.0
    %1721 = vmatpush1.msra.mxu0 0.0
    %1722 = vmatprep.subr.mxu0 0.0
    %1723 = vmatpush1.msra.mxu0 0.0
    %1724 = vmatprep.subr.mxu0 0.0
    %1725 = vmatpush1.msra.mxu0 0.0
    %1726 = vmatprep.subr.mxu0 0.0
    %1727 = vmatpush1.msra.mxu0 0.0
    %1728 = vmatprep.subr.mxu0 0.0
    %1729 = vmatpush1.msra.mxu0 0.0
    %1730 = vmatprep.subr.mxu0 0.0
    %1731 = vmatpush1.msra.mxu0 0.0
    %1732 = vmatprep.subr.mxu0 0.0
    %1733 = vmatpush1.msra.mxu0 0.0
    %1734 = vmatprep.subr.mxu0 0.0
    %1735 = vmatpush1.msra.mxu0 0.0
    %1736 = vmatprep.subr.mxu0 0.0
    %1737 = vmatpush1.msra.mxu0 0.0
    %1738 = vmatprep.subr.mxu0 0.0
    %1739 = vmatpush1.msra.mxu0 %v282
    %1740 = vmatprep.subr.mxu0 0.0
    %1741 = vmatpush1.msra.mxu0 %v281
    %1742 = vmatprep.subr.mxu0 0.0
    %1743 = vmatpush1.msra.mxu0 %v280
    %1744 = vmatprep.subr.mxu0 0.0
    %1745 = vmatpush1.msra.mxu0 %v279
    %1746 = vmatprep.subr.mxu0 0.0
    %1747 = vmatpush2.msra.mxu0 0.0
    %1748 = vmatprep.subr.mxu0 0.0
    %1749 = vmatpush2.msra.mxu0 0.0
    %1750 = vmatprep.subr.mxu0 0.0
    %1751 = vmatpush2.msra.mxu0 0.0
    %1752 = vmatprep.subr.mxu0 0.0
    %1753 = vmatpush2.msra.mxu0 0.0
    %1754 = vmatprep.subr.mxu0 0.0
    %1755 = vmatpush2.msra.mxu0 0.0
    %1756 = vmatprep.subr.mxu0 0.0
    %1757 = vmatpush2.msra.mxu0 0.0
    %1758 = vmatprep.subr.mxu0 0.0
    %1759 = vmatpush2.msra.mxu0 0.0
    %1760 = vmatprep.subr.mxu0 0.0
    %1761 = vmatpush2.msra.mxu0 0.0
    %1762 = vmatprep.subr.mxu0 0.0
    %1763 = vmatpush2.msra.mxu0 0.0
    %1764 = vmatprep.subr.mxu0 0.0
    %1765 = vmatpush2.msra.mxu0 0.0
    %1766 = vmatprep.subr.mxu0 0.0
    %1767 = vmatpush2.msra.mxu0 0.0
    %1768 = vmatprep.subr.mxu0 0.0
    %1769 = vmatpush2.msra.mxu0 0.0
    %1770 = vmatprep.subr.mxu0 0.0
    %1771 = vmatpush2.msra.mxu0 0.0
    %1772 = vmatprep.subr.mxu0 0.0
    %1773 = vmatpush2.msra.mxu0 0.0
    %1774 = vmatprep.subr.mxu0 0.0
    %1775 = vmatpush2.msra.mxu0 0.0
    %1776 = vmatprep.subr.mxu0 0.0
    %1777 = vmatpush2.msra.mxu0 0.0
    %1778 = vmatprep.mubr.f32.mxu0 0.0
    %1779 = vmatmul.mubr.f32.gmra.mxu0 %v1712
    %v1780 = vpop.f32.mrf.mxu0
    %v1781 = vadd.f32 0.0, %v1780
    %v1782 = vpop.f32.mrf.mxu0
    %1783 = vdwg.mxu0
    %v1784 = vadd.f32 %v266, %v1781
    %v1785 = vmul.f32 %v1784, %v277
    %v1786 = vtanh.pop %v1785
    %v1787 = vmul.f32 %v277, %v1786
    %v1788 = vadd.f32 %v1787, %v278
    %v1789 = vmul.f32 %v1788, %v1535
    %1791 = vrot.lane.b32.xlu0 %v1788, 64
    %v1792 = vpop.permute.xlu0 %1791
    %v1794 = vmul.f32 %v1788, %v1792
    %1796 = vrot.lane.b32.xlu0 %v1794, 32
    %v1797 = vpop.permute.xlu0 %1796
    %v1799 = vadd.f32 %v1789, %v1797
    %v1800 = vtanh.pop %v1799
    %1802 = vrot.lane.b32.xlu0 %v1800, 64
    %v1803 = vpop.permute.xlu0 %1802
    %v1805 = vmul.f32 %v1788, %v1803
    %1807 = vrot.lane.b32.xlu0 %v1708, 32
    %v1808 = vpop.permute.xlu0 %1807
    %v1809 = vsel %vm298, %v1808, 0
    %1811 = vmatprep.subr.mxu0 0.0
    %1812 = vmatpush1.msra.mxu0 0.0
    %1813 = vmatprep.subr.mxu0 0.0
    %1814 = vmatpush1.msra.mxu0 0.0
    %1815 = vmatprep.subr.mxu0 0.0
    %1816 = vmatpush1.msra.mxu0 0.0
    %1817 = vmatprep.subr.mxu0 0.0
    %1818 = vmatpush1.msra.mxu0 0.0
    %1819 = vmatprep.subr.mxu0 0.0
    %1820 = vmatpush1.msra.mxu0 0.0
    %1821 = vmatprep.subr.mxu0 0.0
    %1822 = vmatpush1.msra.mxu0 0.0
    %1823 = vmatprep.subr.mxu0 0.0
    %1824 = vmatpush1.msra.mxu0 0.0
    %1825 = vmatprep.subr.mxu0 0.0
    %1826 = vmatpush1.msra.mxu0 0.0
    %1827 = vmatprep.subr.mxu0 0.0
    %1828 = vmatpush1.msra.mxu0 0.0
    %1829 = vmatprep.subr.mxu0 0.0
    %1830 = vmatpush1.msra.mxu0 0.0
    %1831 = vmatprep.subr.mxu0 0.0
    %1832 = vmatpush1.msra.mxu0 0.0
    %1833 = vmatprep.subr.mxu0 0.0
    %1834 = vmatpush1.msra.mxu0 0.0
    %1835 = vmatprep.subr.mxu0 0.0
    %1836 = vmatpush1.msra.mxu0 %v290
    %1837 = vmatprep.subr.mxu0 0.0
    %1838 = vmatpush1.msra.mxu0 %v289
    %1839 = vmatprep.subr.mxu0 0.0
    %1840 = vmatpush1.msra.mxu0 %v288
    %1841 = vmatprep.subr.mxu0 0.0
    %1842 = vmatpush1.msra.mxu0 %v287
    %1843 = vmatprep.subr.mxu0 0.0
    %1844 = vmatpush2.msra.mxu0 0.0
    %1845 = vmatprep.subr.mxu0 0.0
    %1846 = vmatpush2.msra.mxu0 0.0
    %1847 = vmatprep.subr.mxu0 0.0
    %1848 = vmatpush2.msra.mxu0 0.0
    %1849 = vmatprep.subr.mxu0 0.0
    %1850 = vmatpush2.msra.mxu0 0.0
    %1851 = vmatprep.subr.mxu0 0.0
    %1852 = vmatpush2.msra.mxu0 0.0
    %1853 = vmatprep.subr.mxu0 0.0
    %1854 = vmatpush2.msra.mxu0 0.0
    %1855 = vmatprep.subr.mxu0 0.0
    %1856 = vmatpush2.msra.mxu0 0.0
    %1857 = vmatprep.subr.mxu0 0.0
    %1858 = vmatpush2.msra.mxu0 0.0
    %1859 = vmatprep.subr.mxu0 0.0
    %1860 = vmatpush2.msra.mxu0 0.0
    %1861 = vmatprep.subr.mxu0 0.0
    %1862 = vmatpush2.msra.mxu0 0.0
    %1863 = vmatprep.subr.mxu0 0.0
    %1864 = vmatpush2.msra.mxu0 0.0
    %1865 = vmatprep.subr.mxu0 0.0
    %1866 = vmatpush2.msra.mxu0 0.0
    %1867 = vmatprep.subr.mxu0 0.0
    %1868 = vmatpush2.msra.mxu0 0.0
    %1869 = vmatprep.subr.mxu0 0.0
    %1870 = vmatpush2.msra.mxu0 0.0
    %1871 = vmatprep.subr.mxu0 0.0
    %1872 = vmatpush2.msra.mxu0 0.0
    %1873 = vmatprep.subr.mxu0 0.0
    %1874 = vmatpush2.msra.mxu0 0.0
    %1875 = vmatprep.mubr.f32.mxu0 0.0
    %1876 = vmatmul.mubr.f32.gmra.mxu0 %v1809
    %v1877 = vpop.f32.mrf.mxu0
    %v1878 = vadd.f32 0.0, %v1877
    %v1879 = vpop.f32.mrf.mxu0
    %1880 = vdwg.mxu0
    %1881 = vmatprep.subr.mxu0 0.0
    %1882 = vmatpush1.msra.mxu0 0.0
    %1883 = vmatprep.subr.mxu0 0.0
    %1884 = vmatpush1.msra.mxu0 0.0
    %1885 = vmatprep.subr.mxu0 0.0
    %1886 = vmatpush1.msra.mxu0 0.0
    %1887 = vmatprep.subr.mxu0 0.0
    %1888 = vmatpush1.msra.mxu0 0.0
    %1889 = vmatprep.subr.mxu0 0.0
    %1890 = vmatpush1.msra.mxu0 0.0
    %1891 = vmatprep.subr.mxu0 0.0
    %1892 = vmatpush1.msra.mxu0 0.0
    %1893 = vmatprep.subr.mxu0 0.0
    %1894 = vmatpush1.msra.mxu0 0.0
    %1895 = vmatprep.subr.mxu0 0.0
    %1896 = vmatpush1.msra.mxu0 0.0
    %1897 = vmatprep.subr.mxu0 0.0
    %1898 = vmatpush1.msra.mxu0 0.0
    %1899 = vmatprep.subr.mxu0 0.0
    %1900 = vmatpush1.msra.mxu0 0.0
    %1901 = vmatprep.subr.mxu0 0.0
    %1902 = vmatpush1.msra.mxu0 0.0
    %1903 = vmatprep.subr.mxu0 0.0
    %1904 = vmatpush1.msra.mxu0 0.0
    %1905 = vmatprep.subr.mxu0 0.0
    %1906 = vmatpush1.msra.mxu0 %v286
    %1907 = vmatprep.subr.mxu0 0.0
    %1908 = vmatpush1.msra.mxu0 %v285
    %1909 = vmatprep.subr.mxu0 0.0
    %1910 = vmatpush1.msra.mxu0 %v284
    %1911 = vmatprep.subr.mxu0 0.0
    %1912 = vmatpush1.msra.mxu0 %v283
    %1913 = vmatprep.subr.mxu0 0.0
    %1914 = vmatpush2.msra.mxu0 0.0
    %1915 = vmatprep.subr.mxu0 0.0
    %1916 = vmatpush2.msra.mxu0 0.0
    %1917 = vmatprep.subr.mxu0 0.0
    %1918 = vmatpush2.msra.mxu0 0.0
    %1919 = vmatprep.subr.mxu0 0.0
    %1920 = vmatpush2.msra.mxu0 0.0
    %1921 = vmatprep.subr.mxu0 0.0
    %1922 = vmatpush2.msra.mxu0 0.0
    %1923 = vmatprep.subr.mxu0 0.0
    %1924 = vmatpush2.msra.mxu0 0.0
    %1925 = vmatprep.subr.mxu0 0.0
    %1926 = vmatpush2.msra.mxu0 0.0
    %1927 = vmatprep.subr.mxu0 0.0
    %1928 = vmatpush2.msra.mxu0 0.0
    %1929 = vmatprep.subr.mxu0 0.0
    %1930 = vmatpush2.msra.mxu0 0.0
    %1931 = vmatprep.subr.mxu0 0.0
    %1932 = vmatpush2.msra.mxu0 0.0
    %1933 = vmatprep.subr.mxu0 0.0
    %1934 = vmatpush2.msra.mxu0 0.0
    %1935 = vmatprep.subr.mxu0 0.0
    %1936 = vmatpush2.msra.mxu0 0.0
    %1937 = vmatprep.subr.mxu0 0.0
    %1938 = vmatpush2.msra.mxu0 0.0
    %1939 = vmatprep.subr.mxu0 0.0
    %1940 = vmatpush2.msra.mxu0 0.0
    %1941 = vmatprep.subr.mxu0 0.0
    %1942 = vmatpush2.msra.mxu0 0.0
    %1943 = vmatprep.subr.mxu0 0.0
    %1944 = vmatpush2.msra.mxu0 0.0
    %1945 = vmatprep.mubr.f32.mxu0 0.0
    %1946 = vmatmul.mubr.f32.gmra.mxu0 %v1712
    %v1947 = vpop.f32.mrf.mxu0
    %v1948 = vadd.f32 %v1878, %v1947
    %v1949 = vpop.f32.mrf.mxu0
    %1950 = vdwg.mxu0
    %v1951 = vadd.f32 %v1948, %v296
    %v1952 = vmul.f32 %v1951, %v277
    %v1953 = vtanh.pop %v1952
    %v1954 = vmul.f32 %v277, %v1953
    %v1955 = vadd.f32 %v1954, %v278
    %v1956 = vmul.f32 %v1955, %v1702
    %1958 = vrot.lane.b32.xlu0 %v1955, 64
    %v1959 = vpop.permute.xlu0 %1958
    %v1961 = vmul.f32 %v1955, %v1959
    %1963 = vrot.lane.b32.xlu0 %v1961, 32
    %v1964 = vpop.permute.xlu0 %1963
    %v1966 = vadd.f32 %v1956, %v1964
    %v1967 = vtanh.pop %v1966
    %1969 = vrot.lane.b32.xlu0 %v1967, 64
    %v1970 = vpop.permute.xlu0 %1969
    %v1972 = vmul.f32 %v1955, %v1970
    %1974 = vrot.lane.b32.xlu0 %v1805, 32
    %v1975 = vpop.permute.xlu0 %1974
    %v1976 = vsel %vm298, %v1975, 0
    %1978 = vmatprep.subr.mxu0 0.0
    %1979 = vmatpush1.msra.mxu0 0.0
    %1980 = vmatprep.subr.mxu0 0.0
    %1981 = vmatpush1.msra.mxu0 0.0
    %1982 = vmatprep.subr.mxu0 0.0
    %1983 = vmatpush1.msra.mxu0 0.0
    %1984 = vmatprep.subr.mxu0 0.0
    %1985 = vmatpush1.msra.mxu0 0.0
    %1986 = vmatprep.subr.mxu0 0.0
    %1987 = vmatpush1.msra.mxu0 0.0
    %1988 = vmatprep.subr.mxu0 0.0
    %1989 = vmatpush1.msra.mxu0 0.0
    %1990 = vmatprep.subr.mxu0 0.0
    %1991 = vmatpush1.msra.mxu0 0.0
    %1992 = vmatprep.subr.mxu0 0.0
    %1993 = vmatpush1.msra.mxu0 0.0
    %1994 = vmatprep.subr.mxu0 0.0
    %1995 = vmatpush1.msra.mxu0 0.0
    %1996 = vmatprep.subr.mxu0 0.0
    %1997 = vmatpush1.msra.mxu0 0.0
    %1998 = vmatprep.subr.mxu0 0.0
    %1999 = vmatpush1.msra.mxu0 0.0
    %2000 = vmatprep.subr.mxu0 0.0
    %2001 = vmatpush1.msra.mxu0 0.0
    %2002 = vmatprep.subr.mxu0 0.0
    %2003 = vmatpush1.msra.mxu0 %v282
    %2004 = vmatprep.subr.mxu0 0.0
    %2005 = vmatpush1.msra.mxu0 %v281
    %2006 = vmatprep.subr.mxu0 0.0
    %2007 = vmatpush1.msra.mxu0 %v280
    %2008 = vmatprep.subr.mxu0 0.0
    %2009 = vmatpush1.msra.mxu0 %v279
    %2010 = vmatprep.subr.mxu0 0.0
    %2011 = vmatpush2.msra.mxu0 0.0
    %2012 = vmatprep.subr.mxu0 0.0
    %2013 = vmatpush2.msra.mxu0 0.0
    %2014 = vmatprep.subr.mxu0 0.0
    %2015 = vmatpush2.msra.mxu0 0.0
    %2016 = vmatprep.subr.mxu0 0.0
    %2017 = vmatpush2.msra.mxu0 0.0
    %2018 = vmatprep.subr.mxu0 0.0
    %2019 = vmatpush2.msra.mxu0 0.0
    %2020 = vmatprep.subr.mxu0 0.0
    %2021 = vmatpush2.msra.mxu0 0.0
    %2022 = vmatprep.subr.mxu0 0.0
    %2023 = vmatpush2.msra.mxu0 0.0
    %2024 = vmatprep.subr.mxu0 0.0
    %2025 = vmatpush2.msra.mxu0 0.0
    %2026 = vmatprep.subr.mxu0 0.0
    %2027 = vmatpush2.msra.mxu0 0.0
    %2028 = vmatprep.subr.mxu0 0.0
    %2029 = vmatpush2.msra.mxu0 0.0
    %2030 = vmatprep.subr.mxu0 0.0
    %2031 = vmatpush2.msra.mxu0 0.0
    %2032 = vmatprep.subr.mxu0 0.0
    %2033 = vmatpush2.msra.mxu0 0.0
    %2034 = vmatprep.subr.mxu0 0.0
    %2035 = vmatpush2.msra.mxu0 0.0
    %2036 = vmatprep.subr.mxu0 0.0
    %2037 = vmatpush2.msra.mxu0 0.0
    %2038 = vmatprep.subr.mxu0 0.0
    %2039 = vmatpush2.msra.mxu0 0.0
    %2040 = vmatprep.subr.mxu0 0.0
    %2041 = vmatpush2.msra.mxu0 0.0
    %2042 = vmatprep.mubr.f32.mxu0 0.0
    %2043 = vmatmul.mubr.f32.gmra.mxu0 %v1976
    %v2044 = vpop.f32.mrf.mxu0
    %v2045 = vadd.f32 0.0, %v2044
    %v2046 = vpop.f32.mrf.mxu0
    %2047 = vdwg.mxu0
    %v2048 = vadd.f32 %v271, %v2045
    %v2049 = vmul.f32 %v2048, %v277
    %v2050 = vtanh.pop %v2049
    %v2051 = vmul.f32 %v277, %v2050
    %v2052 = vadd.f32 %v2051, %v278
    %v2053 = vmul.f32 %v2052, %v1799
    %2055 = vrot.lane.b32.xlu0 %v2052, 64
    %v2056 = vpop.permute.xlu0 %2055
    %v2058 = vmul.f32 %v2052, %v2056
    %2060 = vrot.lane.b32.xlu0 %v2058, 32
    %v2061 = vpop.permute.xlu0 %2060
    %v2063 = vadd.f32 %v2053, %v2061
    %v2064 = vtanh.pop %v2063
    %2066 = vrot.lane.b32.xlu0 %v2064, 64
    %v2067 = vpop.permute.xlu0 %2066
    %v2069 = vmul.f32 %v2052, %v2067
    %2071 = vrot.lane.b32.xlu0 %v1972, 32
    %v2072 = vpop.permute.xlu0 %2071
    %v2073 = vsel %vm298, %v2072, 0
    %2075 = vmatprep.subr.mxu0 0.0
    %2076 = vmatpush1.msra.mxu0 0.0
    %2077 = vmatprep.subr.mxu0 0.0
    %2078 = vmatpush1.msra.mxu0 0.0
    %2079 = vmatprep.subr.mxu0 0.0
    %2080 = vmatpush1.msra.mxu0 0.0
    %2081 = vmatprep.subr.mxu0 0.0
    %2082 = vmatpush1.msra.mxu0 0.0
    %2083 = vmatprep.subr.mxu0 0.0
    %2084 = vmatpush1.msra.mxu0 0.0
    %2085 = vmatprep.subr.mxu0 0.0
    %2086 = vmatpush1.msra.mxu0 0.0
    %2087 = vmatprep.subr.mxu0 0.0
    %2088 = vmatpush1.msra.mxu0 0.0
    %2089 = vmatprep.subr.mxu0 0.0
    %2090 = vmatpush1.msra.mxu0 0.0
    %2091 = vmatprep.subr.mxu0 0.0
    %2092 = vmatpush1.msra.mxu0 0.0
    %2093 = vmatprep.subr.mxu0 0.0
    %2094 = vmatpush1.msra.mxu0 0.0
    %2095 = vmatprep.subr.mxu0 0.0
    %2096 = vmatpush1.msra.mxu0 0.0
    %2097 = vmatprep.subr.mxu0 0.0
    %2098 = vmatpush1.msra.mxu0 0.0
    %2099 = vmatprep.subr.mxu0 0.0
    %2100 = vmatpush1.msra.mxu0 %v290
    %2101 = vmatprep.subr.mxu0 0.0
    %2102 = vmatpush1.msra.mxu0 %v289
    %2103 = vmatprep.subr.mxu0 0.0
    %2104 = vmatpush1.msra.mxu0 %v288
    %2105 = vmatprep.subr.mxu0 0.0
    %2106 = vmatpush1.msra.mxu0 %v287
    %2107 = vmatprep.subr.mxu0 0.0
    %2108 = vmatpush2.msra.mxu0 0.0
    %2109 = vmatprep.subr.mxu0 0.0
    %2110 = vmatpush2.msra.mxu0 0.0
    %2111 = vmatprep.subr.mxu0 0.0
    %2112 = vmatpush2.msra.mxu0 0.0
    %2113 = vmatprep.subr.mxu0 0.0
    %2114 = vmatpush2.msra.mxu0 0.0
    %2115 = vmatprep.subr.mxu0 0.0
    %2116 = vmatpush2.msra.mxu0 0.0
    %2117 = vmatprep.subr.mxu0 0.0
    %2118 = vmatpush2.msra.mxu0 0.0
    %2119 = vmatprep.subr.mxu0 0.0
    %2120 = vmatpush2.msra.mxu0 0.0
    %2121 = vmatprep.subr.mxu0 0.0
    %2122 = vmatpush2.msra.mxu0 0.0
    %2123 = vmatprep.subr.mxu0 0.0
    %2124 = vmatpush2.msra.mxu0 0.0
    %2125 = vmatprep.subr.mxu0 0.0
    %2126 = vmatpush2.msra.mxu0 0.0
    %2127 = vmatprep.subr.mxu0 0.0
    %2128 = vmatpush2.msra.mxu0 0.0
    %2129 = vmatprep.subr.mxu0 0.0
    %2130 = vmatpush2.msra.mxu0 0.0
    %2131 = vmatprep.subr.mxu0 0.0
    %2132 = vmatpush2.msra.mxu0 0.0
    %2133 = vmatprep.subr.mxu0 0.0
    %2134 = vmatpush2.msra.mxu0 0.0
    %2135 = vmatprep.subr.mxu0 0.0
    %2136 = vmatpush2.msra.mxu0 0.0
    %2137 = vmatprep.subr.mxu0 0.0
    %2138 = vmatpush2.msra.mxu0 0.0
    %2139 = vmatprep.mubr.f32.mxu0 0.0
    %2140 = vmatmul.mubr.f32.gmra.mxu0 %v2073
    %v2141 = vpop.f32.mrf.mxu0
    %v2142 = vadd.f32 0.0, %v2141
    %v2143 = vpop.f32.mrf.mxu0
    %2144 = vdwg.mxu0
    %2145 = vmatprep.subr.mxu0 0.0
    %2146 = vmatpush1.msra.mxu0 0.0
    %2147 = vmatprep.subr.mxu0 0.0
    %2148 = vmatpush1.msra.mxu0 0.0
    %2149 = vmatprep.subr.mxu0 0.0
    %2150 = vmatpush1.msra.mxu0 0.0
    %2151 = vmatprep.subr.mxu0 0.0
    %2152 = vmatpush1.msra.mxu0 0.0
    %2153 = vmatprep.subr.mxu0 0.0
    %2154 = vmatpush1.msra.mxu0 0.0
    %2155 = vmatprep.subr.mxu0 0.0
    %2156 = vmatpush1.msra.mxu0 0.0
    %2157 = vmatprep.subr.mxu0 0.0
    %2158 = vmatpush1.msra.mxu0 0.0
    %2159 = vmatprep.subr.mxu0 0.0
    %2160 = vmatpush1.msra.mxu0 0.0
    %2161 = vmatprep.subr.mxu0 0.0
    %2162 = vmatpush1.msra.mxu0 0.0
    %2163 = vmatprep.subr.mxu0 0.0
    %2164 = vmatpush1.msra.mxu0 0.0
    %2165 = vmatprep.subr.mxu0 0.0
    %2166 = vmatpush1.msra.mxu0 0.0
    %2167 = vmatprep.subr.mxu0 0.0
    %2168 = vmatpush1.msra.mxu0 0.0
    %2169 = vmatprep.subr.mxu0 0.0
    %2170 = vmatpush1.msra.mxu0 %v286
    %2171 = vmatprep.subr.mxu0 0.0
    %2172 = vmatpush1.msra.mxu0 %v285
    %2173 = vmatprep.subr.mxu0 0.0
    %2174 = vmatpush1.msra.mxu0 %v284
    %2175 = vmatprep.subr.mxu0 0.0
    %2176 = vmatpush1.msra.mxu0 %v283
    %2177 = vmatprep.subr.mxu0 0.0
    %2178 = vmatpush2.msra.mxu0 0.0
    %2179 = vmatprep.subr.mxu0 0.0
    %2180 = vmatpush2.msra.mxu0 0.0
    %2181 = vmatprep.subr.mxu0 0.0
    %2182 = vmatpush2.msra.mxu0 0.0
    %2183 = vmatprep.subr.mxu0 0.0
    %2184 = vmatpush2.msra.mxu0 0.0
    %2185 = vmatprep.subr.mxu0 0.0
    %2186 = vmatpush2.msra.mxu0 0.0
    %2187 = vmatprep.subr.mxu0 0.0
    %2188 = vmatpush2.msra.mxu0 0.0
    %2189 = vmatprep.subr.mxu0 0.0
    %2190 = vmatpush2.msra.mxu0 0.0
    %2191 = vmatprep.subr.mxu0 0.0
    %2192 = vmatpush2.msra.mxu0 0.0
    %2193 = vmatprep.subr.mxu0 0.0
    %2194 = vmatpush2.msra.mxu0 0.0
    %2195 = vmatprep.subr.mxu0 0.0
    %2196 = vmatpush2.msra.mxu0 0.0
    %2197 = vmatprep.subr.mxu0 0.0
    %2198 = vmatpush2.msra.mxu0 0.0
    %2199 = vmatprep.subr.mxu0 0.0
    %2200 = vmatpush2.msra.mxu0 0.0
    %2201 = vmatprep.subr.mxu0 0.0
    %2202 = vmatpush2.msra.mxu0 0.0
    %2203 = vmatprep.subr.mxu0 0.0
    %2204 = vmatpush2.msra.mxu0 0.0
    %2205 = vmatprep.subr.mxu0 0.0
    %2206 = vmatpush2.msra.mxu0 0.0
    %2207 = vmatprep.subr.mxu0 0.0
    %2208 = vmatpush2.msra.mxu0 0.0
    %2209 = vmatprep.mubr.f32.mxu0 0.0
    %2210 = vmatmul.mubr.f32.gmra.mxu0 %v1976
    %v2211 = vpop.f32.mrf.mxu0
    %v2212 = vadd.f32 %v2142, %v2211
    %v2213 = vpop.f32.mrf.mxu0
    %2214 = vdwg.mxu0
    %v2215 = vadd.f32 %v2212, %v296
    %v2216 = vmul.f32 %v2215, %v277
    %v2217 = vtanh.pop %v2216
    %v2218 = vmul.f32 %v277, %v2217
    %v2219 = vadd.f32 %v2218, %v278
    %v2220 = vmul.f32 %v2219, %v1966
    %2222 = vrot.lane.b32.xlu0 %v2219, 64
    %v2223 = vpop.permute.xlu0 %2222
    %v2225 = vmul.f32 %v2219, %v2223
    %2227 = vrot.lane.b32.xlu0 %v2225, 32
    %v2228 = vpop.permute.xlu0 %2227
    %v2230 = vadd.f32 %v2220, %v2228
    %v2231 = vtanh.pop %v2230
    %2233 = vrot.lane.b32.xlu0 %v2231, 64
    %v2234 = vpop.permute.xlu0 %2233
    %v2236 = vmul.f32 %v2219, %v2234
    %2238 = vrot.lane.b32.xlu0 %v2236, 32
    %v2239 = vpop.permute.xlu0 %2238
    %v2240 = vsel %vm298, %v2239, 0
    %2242 = vmatprep.subr.mxu0 0.0
    %2243 = vmatpush1.msra.mxu0 0.0
    %2244 = vmatprep.subr.mxu0 0.0
    %2245 = vmatpush1.msra.mxu0 0.0
    %2246 = vmatprep.subr.mxu0 0.0
    %2247 = vmatpush1.msra.mxu0 0.0
    %2248 = vmatprep.subr.mxu0 0.0
    %2249 = vmatpush1.msra.mxu0 0.0
    %2250 = vmatprep.subr.mxu0 0.0
    %2251 = vmatpush1.msra.mxu0 0.0
    %2252 = vmatprep.subr.mxu0 0.0
    %2253 = vmatpush1.msra.mxu0 0.0
    %2254 = vmatprep.subr.mxu0 0.0
    %2255 = vmatpush1.msra.mxu0 0.0
    %2256 = vmatprep.subr.mxu0 0.0
    %2257 = vmatpush1.msra.mxu0 0.0
    %2258 = vmatprep.subr.mxu0 0.0
    %2259 = vmatpush1.msra.mxu0 0.0
    %2260 = vmatprep.subr.mxu0 0.0
    %2261 = vmatpush1.msra.mxu0 0.0
    %2262 = vmatprep.subr.mxu0 0.0
    %2263 = vmatpush1.msra.mxu0 0.0
    %2264 = vmatprep.subr.mxu0 0.0
    %2265 = vmatpush1.msra.mxu0 0.0
    %2266 = vmatprep.subr.mxu0 0.0
    %2267 = vmatpush1.msra.mxu0 %v290
    %2268 = vmatprep.subr.mxu0 0.0
    %2269 = vmatpush1.msra.mxu0 %v289
    %2270 = vmatprep.subr.mxu0 0.0
    %2271 = vmatpush1.msra.mxu0 %v288
    %2272 = vmatprep.subr.mxu0 0.0
    %2273 = vmatpush1.msra.mxu0 %v287
    %2274 = vmatprep.subr.mxu0 0.0
    %2275 = vmatpush2.msra.mxu0 0.0
    %2276 = vmatprep.subr.mxu0 0.0
    %2277 = vmatpush2.msra.mxu0 0.0
    %2278 = vmatprep.subr.mxu0 0.0
    %2279 = vmatpush2.msra.mxu0 0.0
    %2280 = vmatprep.subr.mxu0 0.0
    %2281 = vmatpush2.msra.mxu0 0.0
    %2282 = vmatprep.subr.mxu0 0.0
    %2283 = vmatpush2.msra.mxu0 0.0
    %2284 = vmatprep.subr.mxu0 0.0
    %2285 = vmatpush2.msra.mxu0 0.0
    %2286 = vmatprep.subr.mxu0 0.0
    %2287 = vmatpush2.msra.mxu0 0.0
    %2288 = vmatprep.subr.mxu0 0.0
    %2289 = vmatpush2.msra.mxu0 0.0
    %2290 = vmatprep.subr.mxu0 0.0
    %2291 = vmatpush2.msra.mxu0 0.0
    %2292 = vmatprep.subr.mxu0 0.0
    %2293 = vmatpush2.msra.mxu0 0.0
    %2294 = vmatprep.subr.mxu0 0.0
    %2295 = vmatpush2.msra.mxu0 0.0
    %2296 = vmatprep.subr.mxu0 0.0
    %2297 = vmatpush2.msra.mxu0 0.0
    %2298 = vmatprep.subr.mxu0 0.0
    %2299 = vmatpush2.msra.mxu0 0.0
    %2300 = vmatprep.subr.mxu0 0.0
    %2301 = vmatpush2.msra.mxu0 0.0
    %2302 = vmatprep.subr.mxu0 0.0
    %2303 = vmatpush2.msra.mxu0 0.0
    %2304 = vmatprep.subr.mxu0 0.0
    %2305 = vmatpush2.msra.mxu0 0.0
    %2306 = vmatprep.mubr.f32.mxu0 0.0
    %2307 = vmatmul.mubr.f32.gmra.mxu0 %v2240
    %v2308 = vpop.f32.mrf.mxu0
    %v2309 = vadd.f32 0.0, %v2308
    %v2310 = vpop.f32.mrf.mxu0
    %2311 = vdwg.mxu0
    %2313 = vrot.lane.b32.xlu0 %v2069, 32
    %v2314 = vpop.permute.xlu0 %2313
    %v2315 = vsel %vm298, %v2314, 0
    %2317 = vmatprep.subr.mxu0 0.0
    %2318 = vmatpush1.msra.mxu0 0.0
    %2319 = vmatprep.subr.mxu0 0.0
    %2320 = vmatpush1.msra.mxu0 0.0
    %2321 = vmatprep.subr.mxu0 0.0
    %2322 = vmatpush1.msra.mxu0 0.0
    %2323 = vmatprep.subr.mxu0 0.0
    %2324 = vmatpush1.msra.mxu0 0.0
    %2325 = vmatprep.subr.mxu0 0.0
    %2326 = vmatpush1.msra.mxu0 0.0
    %2327 = vmatprep.subr.mxu0 0.0
    %2328 = vmatpush1.msra.mxu0 0.0
    %2329 = vmatprep.subr.mxu0 0.0
    %2330 = vmatpush1.msra.mxu0 0.0
    %2331 = vmatprep.subr.mxu0 0.0
    %2332 = vmatpush1.msra.mxu0 0.0
    %2333 = vmatprep.subr.mxu0 0.0
    %2334 = vmatpush1.msra.mxu0 0.0
    %2335 = vmatprep.subr.mxu0 0.0
    %2336 = vmatpush1.msra.mxu0 0.0
    %2337 = vmatprep.subr.mxu0 0.0
    %2338 = vmatpush1.msra.mxu0 0.0
    %2339 = vmatprep.subr.mxu0 0.0
    %2340 = vmatpush1.msra.mxu0 0.0
    %2341 = vmatprep.subr.mxu0 0.0
    %2342 = vmatpush1.msra.mxu0 %v286
    %2343 = vmatprep.subr.mxu0 0.0
    %2344 = vmatpush1.msra.mxu0 %v285
    %2345 = vmatprep.subr.mxu0 0.0
    %2346 = vmatpush1.msra.mxu0 %v284
    %2347 = vmatprep.subr.mxu0 0.0
    %2348 = vmatpush1.msra.mxu0 %v283
    %2349 = vmatprep.subr.mxu0 0.0
    %2350 = vmatpush2.msra.mxu0 0.0
    %2351 = vmatprep.subr.mxu0 0.0
    %2352 = vmatpush2.msra.mxu0 0.0
    %2353 = vmatprep.subr.mxu0 0.0
    %2354 = vmatpush2.msra.mxu0 0.0
    %2355 = vmatprep.subr.mxu0 0.0
    %2356 = vmatpush2.msra.mxu0 0.0
    %2357 = vmatprep.subr.mxu0 0.0
    %2358 = vmatpush2.msra.mxu0 0.0
    %2359 = vmatprep.subr.mxu0 0.0
    %2360 = vmatpush2.msra.mxu0 0.0
    %2361 = vmatprep.subr.mxu0 0.0
    %2362 = vmatpush2.msra.mxu0 0.0
    %2363 = vmatprep.subr.mxu0 0.0
    %2364 = vmatpush2.msra.mxu0 0.0
    %2365 = vmatprep.subr.mxu0 0.0
    %2366 = vmatpush2.msra.mxu0 0.0
    %2367 = vmatprep.subr.mxu0 0.0
    %2368 = vmatpush2.msra.mxu0 0.0
    %2369 = vmatprep.subr.mxu0 0.0
    %2370 = vmatpush2.msra.mxu0 0.0
    %2371 = vmatprep.subr.mxu0 0.0
    %2372 = vmatpush2.msra.mxu0 0.0
    %2373 = vmatprep.subr.mxu0 0.0
    %2374 = vmatpush2.msra.mxu0 0.0
    %2375 = vmatprep.subr.mxu0 0.0
    %2376 = vmatpush2.msra.mxu0 0.0
    %2377 = vmatprep.subr.mxu0 0.0
    %2378 = vmatpush2.msra.mxu0 0.0
    %2379 = vmatprep.subr.mxu0 0.0
    %2380 = vmatpush2.msra.mxu0 0.0
    %2381 = vmatprep.mubr.f32.mxu0 0.0
    %2382 = vmatmul.mubr.f32.gmra.mxu0 %v2315
    %v2383 = vpop.f32.mrf.mxu0
    %v2384 = vadd.f32 %v2309, %v2383
    %v2385 = vpop.f32.mrf.mxu0
    %2386 = vdwg.mxu0
    %v2387 = vadd.f32 %v2384, %v296
    %v2388 = vmul.f32 %v2387, %v277
    %v2389 = vtanh.pop %v2388
    %v2390 = vmul.f32 %v277, %v2389
    %v2391 = vadd.f32 %v2390, %v278
    %v2392 = vmul.f32 %v2391, %v2230
    %2394 = vrot.lane.b32.xlu0 %v2391, 64
    %v2395 = vpop.permute.xlu0 %2394
    %v2397 = vmul.f32 %v2391, %v2395
    %2399 = vrot.lane.b32.xlu0 %v2397, 32
    %v2400 = vpop.permute.xlu0 %2399
    %v2402 = vadd.f32 %v2392, %v2400
    %v2403 = vtanh.pop %v2402
    %2405 = vrot.lane.b32.xlu0 %v2403, 64
    %v2406 = vpop.permute.xlu0 %2405
    %v2408 = vmul.f32 %v2391, %v2406
    %vm2410 = vcmask 254976
    %2411 = vst.msk [vmem:[#allocation8] sm:$0x3] %vm2410, %v2314
    %2413 = vrot.lane.b32.xlu0 %v2408, 32
    %v2414 = vpop.permute.xlu0 %2413
    %s2416 = scalar_lea.vmem [#allocation8], 2
    %2417 = vst.msk [vmem:[%s2416] sm:$0x3] %vm2410, %v2414
    %2419 = vrot.lane.b32.xlu0 %v2063, 96
    %v2420 = vpop.permute.xlu0 %2419
    %2422 = vst.msk [vmem:[#allocation9] sm:$0x3] %vm2410, %v2420
    %2424 = vrot.lane.b32.xlu0 %v2402, 96
    %v2425 = vpop.permute.xlu0 %2424
    %s2427 = scalar_lea.vmem [#allocation9], 2
    %2428 = vst.msk [vmem:[%s2427] sm:$0x3] %vm2410, %v2425
    // Predicated region
    $region42: #{tpu_custom_call.1} parent=1 // pred_check
      _
    $region43: #{tpu_custom_call.1} parent=1 // pred_check_branch
      %2430 = sbr.rel (0) target = $region45
    $region44: #{tpu_custom_call.1} parent=1 // pred_region
      %s2432 = ssub.s32 64, 64
      %2433 = vsyncadd [#allocation4], %s2432
      %s2434 = sshll.u32 [#allocation8], 4
      %s2435 = int_to_ptr.vmem [resolvable:$true] %s2434
      %2440 = dma.vmem_to_hbm [thread:$0]  %s2435, 64, %s7, [#allocation4], 32, 32, 2
    $region45: #{tpu_custom_call.1} parent=1 // pred_fallthru
      _
    // Predicated region
    $region46: #{tpu_custom_call.1} parent=1 // pred_check
      _
    $region47: #{tpu_custom_call.1} parent=1 // pred_check_branch
      %2442 = sbr.rel (0) target = $region49
    $region48: #{tpu_custom_call.1} parent=1 // pred_region
      %s2444 = ssub.s32 64, 64
      %2445 = vsyncadd [#allocation10], %s2444
      %s2446 = sshll.u32 [#allocation9], 4
      %s2447 = int_to_ptr.vmem [resolvable:$true] %s2446
      %2452 = dma.vmem_to_hbm [thread:$0]  %s2447, 64, %s8, [#allocation10], 32, 32, 2
    $region49: #{tpu_custom_call.1} parent=1 // pred_fallthru
      _
    // Predicated region
    $region50: #{tpu_custom_call.1} parent=1 // pred_check
      _
    $region51: #{tpu_custom_call.1} parent=1 // pred_check_branch
      %2454 = sbr.rel (0) target = $region53
    $region52: #{tpu_custom_call.1} parent=1 // pred_region
      %2455 = dma.done [#allocation4], 64
    $region53: #{tpu_custom_call.1} parent=1 // pred_fallthru
      _
    // Predicated region
    $region54: #{tpu_custom_call.1} parent=1 // pred_check
      _
    $region55: #{tpu_custom_call.1} parent=1 // pred_check_branch
      %2457 = sbr.rel (0) target = $region57
    $region56: #{tpu_custom_call.1} parent=1 // pred_region
      %2458 = dma.done [#allocation10], 64
    $region57: #{tpu_custom_call.1} parent=1 // pred_fallthru
      _
    %2459 = vsyncpa [#allocation3], 1
    %2460 = vsyncpa [#allocation6], 1
    %2461 = vsyncpa [#allocation4], 1
    %2462 = vsyncpa [#allocation10], 1

</llo_original>
